<compile_context>
chip_gen: v7x
topology: tpu7x:2x2x1
jax: 0.10.0
libtpu: 0.0.40
codegen_flags: <defaults>
</compile_context>

<pallas_src>
import functools

import jax
import jax.numpy as jnp
from jax import lax
from jax.experimental import pallas as pl
from jax.experimental.pallas import tpu as pltpu


def _round_up(x, m):
    return (x + m - 1) // m * m


# ----------------------------------------------------------------------------
# Pallas kernel: one T-chunk per grid step, (h, c) carried in VMEM scratch.
# ----------------------------------------------------------------------------
def _decoder_kernel(x_ref, w_comb_ref, b_comb_ref, w_hh_ref, w_head_ref,
                    b_head_ref, out_ref, g_scr, hseq_scr, h_carry, c_carry,
                    *, unroll):
    Tc, Bp, I = x_ref.shape
    H = w_hh_ref.shape[0]
    G = w_hh_ref.shape[1]           # 4 * H  (packed gate width; 128 for H=32)
    Op = w_head_ref.shape[1]

    # Chunk 0: PyTorch LSTM default h0 = c0 = 0.
    @pl.when(pl.program_id(0) == 0)
    def _():
        h_carry[...] = jnp.zeros_like(h_carry)
        c_carry[...] = jnp.zeros_like(c_carry)

    # --- (1) hoisted input projection for the whole chunk (emb folded into
    #         the ih projection) -- one MXU pass, off the serial critical path.
    x_all = x_ref[...].reshape(Tc * Bp, I)
    g_in = (jnp.dot(x_all.astype(w_comb_ref.dtype), w_comb_ref[...],
                    preferred_element_type=jnp.float32)
            + b_comb_ref[...])
    g_scr[...] = g_in.reshape(Tc, Bp, G)

    # --- (2) serial recurrence: only h @ W_hh + packed gate math on the chain.
    #     Gate order (i, f, g, o) packed into one 128-lane tile; the two
    #     transcendental passes run on the whole tile (2 EUP pushes), gate
    #     selection is cheap static lane slicing.
    def step(t, carry):
        h, c = carry
        g = g_scr[t] + jnp.dot(h.astype(w_hh_ref.dtype), w_hh_ref[...],
                               preferred_element_type=jnp.float32)
        sig = jax.nn.sigmoid(g)
        tnh = jnp.tanh(g)
        i_g = sig[:, 0 * H:1 * H]
        f_g = sig[:, 1 * H:2 * H]
        g_g = tnh[:, 2 * H:3 * H]
        o_g = sig[:, 3 * H:4 * H]
        c_new = f_g * c + i_g * g_g
        h_new = o_g * jnp.tanh(c_new)
        hseq_scr[t] = h_new
        return (h_new, c_new)

    h_fin, c_fin = lax.fori_loop(0, Tc, step, (h_carry[...], c_carry[...]),
                                 unroll=unroll)
    h_carry[...] = h_fin
    c_carry[...] = c_fin

    # --- (3) fused head projection for the whole chunk; lane-dense Op store.
    h_flat = hseq_scr[...].reshape(Tc * Bp, H)
    out = (jnp.dot(h_flat.astype(w_head_ref.dtype), w_head_ref[...],
                   preferred_element_type=jnp.float32)
           + b_head_ref[...])
    out_ref[...] = out.reshape(Tc, Bp, Op).astype(out_ref.dtype)


def _run_decoder(x_tm, w_comb, b_comb, w_hh, w_head, b_head, *, t_chunk):
    T_pad, Bp, I = x_tm.shape
    H = w_hh.shape[0]
    G = w_hh.shape[1]
    Op = w_head.shape[1]
    num_chunks = T_pad // t_chunk
    unroll = True if t_chunk <= 16 else 8     # bounded unroll at large chunks

    weights = (w_comb, b_comb, w_hh, w_head, b_head)

    # Full-array blocks for the weights: block index never changes across the
    # grid, so Pallas does not re-DMA them between chunks.
    def full_spec(arr):
        nd = arr.ndim
        return pl.BlockSpec(arr.shape, lambda t, _nd=nd: (0,) * _nd)

    in_specs = ([pl.BlockSpec((t_chunk, Bp, I), lambda t: (t, 0, 0))]
                + [full_spec(w) for w in weights])
    out_spec = pl.BlockSpec((t_chunk, Bp, Op), lambda t: (t, 0, 0))

    scratch = [
        pltpu.VMEM((t_chunk, Bp, G), jnp.float32),   # hoisted gate inputs
        pltpu.VMEM((t_chunk, Bp, H), jnp.float32),   # hidden states of chunk
        pltpu.VMEM((Bp, H), jnp.float32),            # h carried across chunks
        pltpu.VMEM((Bp, H), jnp.float32),            # c carried across chunks
    ]

    # Explicit VMEM budget: double-buffered in/out blocks + scratch + headroom.
    def nbytes(shape, dtype):
        n = 1
        for s in shape:
            n *= int(s)
        return n * jnp.dtype(dtype).itemsize

    io_bytes = (nbytes((t_chunk, Bp, I), x_tm.dtype)
                + sum(nbytes(w.shape, w.dtype) for w in weights)
                + nbytes((t_chunk, Bp, Op), jnp.float32))
    scr_bytes = (nbytes((t_chunk, Bp, G), jnp.float32)
                 + nbytes((t_chunk, Bp, H), jnp.float32)
                 + 2 * nbytes((Bp, H), jnp.float32))
    vmem_limit = int(min(64 * 1024 * 1024,
                         max(16 * 1024 * 1024,
                             4 * io_bytes + 2 * scr_bytes + (2 << 20))))

    kernel = functools.partial(_decoder_kernel, unroll=unroll)

    return pl.pallas_call(
        kernel,
        out_shape=jax.ShapeDtypeStruct((T_pad, Bp, Op), jnp.float32),
        grid_spec=pltpu.PrefetchScalarGridSpec(
            num_scalar_prefetch=0,
            grid=(num_chunks,),
            in_specs=in_specs,
            out_specs=out_spec,
            scratch_shapes=scratch,
        ),
        compiler_params=pltpu.CompilerParams(
            # Chunks are serially dependent through the (h, c) carry.
            dimension_semantics=("arbitrary",),
            vmem_limit_bytes=vmem_limit,
        ),
    )(x_tm, *weights)


# ----------------------------------------------------------------------------
# One-time parameter preparation (hoisted out of the per-call forward).
# ----------------------------------------------------------------------------
def prepare_decoder_params(params, sizes, mxu_dtype=jnp.float32):
    total_out = (2 * sizes["time_size"] + 2 * sizes["node_label_size"]
                 + sizes["edge_label_size"])
    Op = max(_round_up(total_out, 128), 128)   # lane-dense head output slab

    hi = jax.lax.Precision.HIGHEST
    # Fold the emb Linear into the LSTM input projection (exact affine fold;
    # there is no nonlinearity between emb and the LSTM in the reference).
    w_comb = jnp.dot(params["w_emb"], params["w_ih"], precision=hi)
    b_comb = (jnp.dot(params["b_emb"], params["w_ih"], precision=hi)
              + params["b_ih"] + params["b_hh"])

    # Head weights padded on the out dim only (unmasked lane-dense store).
    w_head = jnp.pad(params["w_head"], ((0, 0), (0, Op - total_out)))
    b_head = jnp.pad(params["b_head"], ((0, 0), (0, Op - total_out)))

    return dict(
        w_rep=params["w_rep"], b_rep=params["b_rep"],
        w_comb=w_comb.astype(mxu_dtype),          # (I, 4H)
        b_comb=b_comb.astype(jnp.float32),        # (1, 4H)
        w_hh=params["w_hh"].astype(mxu_dtype),    # (H, 4H) -- no gate padding
        w_head=w_head.astype(mxu_dtype),          # (H, Op)
        b_head=b_head.astype(jnp.float32),        # (1, Op)
    )


# ----------------------------------------------------------------------------
# Wrapper reproducing DecoderNonConditional.forward
# ----------------------------------------------------------------------------
def decoder_forward(z, x, prep, sizes, *, t_chunk=128):
    time_size = sizes["time_size"]
    node_label_size = sizes["node_label_size"]
    edge_label_size = sizes["edge_label_size"]
    total_out = 2 * time_size + 2 * node_label_size + edge_label_size

    # f_rep: Linear(rep_size -> input_size) on the single latent step.
    z_rep = jnp.einsum("blr,ri->bli", z, prep["w_rep"]) + prep["b_rep"]

    # cat along seq dim, drop last step.
    seq = jnp.concatenate([z_rep, x], axis=1)[:, :-1, :]        # (B, T, I)
    B, T, I = seq.shape

    Bp = max(_round_up(B, 8), 8)              # fill f32 sublanes
    tc = min(t_chunk, max(T, 1))
    T_pad = _round_up(T, tc)

    # pad batch / time with zeros; time-major for cheap per-step indexing.
    seq_p = jnp.pad(seq, ((0, Bp - B), (0, T_pad - T), (0, 0)))
    x_tm = jnp.transpose(seq_p, (1, 0, 2))                      # (T_pad, Bp, I)

    out_tm = _run_decoder(x_tm, prep["w_comb"], prep["b_comb"], prep["w_hh"],
                          prep["w_head"], prep["b_head"], t_chunk=tc)

    # back to batch-major; drop batch / time / output-lane padding.
    out_all = jnp.transpose(out_tm, (1, 0, 2))[:B, :T, :total_out]

    o1 = time_size
    o2 = o1 + time_size
    o3 = o2 + node_label_size
    o4 = o3 + node_label_size
    tu = out_all[:, :, :o1]
    tv = out_all[:, :, o1:o2]
    lu = out_all[:, :, o2:o3]
    lv = out_all[:, :, o3:o4]
    le = out_all[:, :, o4:total_out]
    # out_all already equals cat((tu, tv, lu, lv, le), dim=2): head weights
    # are concatenated in that order.
    return tu, tv, lu, lv, le, out_all


# ----------------------------------------------------------------------------
# Deterministic parameter init (weights stored as (in, out); y = x @ W + b)
# ----------------------------------------------------------------------------
def init_params(key, rep_size, input_size, emb_size, hidden_size,
                time_size, node_label_size, edge_label_size):
    keys = jax.random.split(key, 10)

    def lin(k, n_in, n_out, scale=0.1):
        kw, kb = jax.random.split(k)
        w = jax.random.normal(kw, (n_in, n_out), jnp.float32) * scale
        b = jax.random.normal(kb, (1, n_out), jnp.float32) * scale
        return w, b

    w_rep, b_rep = lin(keys[0], rep_size, input_size)
    w_emb, b_emb = lin(keys[1], input_size, emb_size)
    w_ih, b_ih = lin(keys[2], emb_size, 4 * hidden_size)
    w_hh, b_hh = lin(keys[3], hidden_size, 4 * hidden_size)
    w_tu, b_tu = lin(keys[4], hidden_size, time_size)
    w_tv, b_tv = lin(keys[5], hidden_size, time_size)
    w_lu, b_lu = lin(keys[6], hidden_size, node_label_size)
    w_lv, b_lv = lin(keys[7], hidden_size, node_label_size)
    w_le, b_le = lin(keys[8], hidden_size, edge_label_size)

    w_head = jnp.concatenate([w_tu, w_tv, w_lu, w_lv, w_le], axis=1)
    b_head = jnp.concatenate([b_tu, b_tv, b_lu, b_lv, b_le], axis=1)

    return dict(w_rep=w_rep, b_rep=b_rep, w_emb=w_emb, b_emb=b_emb,
                w_ih=w_ih, b_ih=b_ih, w_hh=w_hh, b_hh=b_hh,
                w_head=w_head, b_head=b_head)


# ----------------------------------------------------------------------------
# Pure-JAX reference (same math as the torch forward) for correctness checks.
# ----------------------------------------------------------------------------
def reference_forward(z, x, p, hidden_size):
    z_rep = jnp.einsum("blr,ri->bli", z, p["w_rep"]) + p["b_rep"]
    seq = jnp.concatenate([z_rep, x], axis=1)[:, :-1, :]
    e = jnp.einsum("bti,ie->bte", seq, p["w_emb"]) + p["b_emb"]
    B, T, _ = e.shape
    H = hidden_size
    h = jnp.zeros((B, H), jnp.float32)
    c = jnp.zeros((B, H), jnp.float32)
    outs = []
    for t in range(T):
        gates = e[:, t, :] @ p["w_ih"] + p["b_ih"] + h @ p["w_hh"] + p["b_hh"]
        i_g = jax.nn.sigmoid(gates[:, 0 * H:1 * H])
        f_g = jax.nn.sigmoid(gates[:, 1 * H:2 * H])
        g_g = jnp.tanh(gates[:, 2 * H:3 * H])
        o_g = jax.nn.sigmoid(gates[:, 3 * H:4 * H])
        c = f_g * c + i_g * g_g
        h = o_g * jnp.tanh(c)
        outs.append(h @ p["w_head"] + p["b_head"])
    return jnp.stack(outs, axis=1)                              # (B, T, total_out)


if __name__ == "__main__":
    # Small shapes consistent with the module.
    B = 2
    rep_size = 8
    time_size = 4
    node_label_size = 3
    edge_label_size = 2
    input_size = 2 * time_size + 2 * node_label_size + edge_label_size  # 16
    emb_size = 16
    hidden_size = 32
    T_dfs = 8   # length of the dfs-code input x

    key = jax.random.PRNGKey(0)
    kz, kx, kp = jax.random.split(key, 3)
    z = jax.random.normal(kz, (B, 1, rep_size), jnp.float32)
    x = jax.random.normal(kx, (B, T_dfs, input_size), jnp.float32)

    params = init_params(kp, rep_size, input_size, emb_size, hidden_size,
                         time_size, node_label_size, edge_label_size)
    sizes = dict(time_size=time_size, node_label_size=node_label_size,
                 edge_label_size=edge_label_size, hidden_size=hidden_size)
    total_out = 2 * time_size + 2 * node_label_size + edge_label_size

    ref = reference_forward(z, x, params, hidden_size)

    fwd = jax.jit(lambda z_, x_, p_: decoder_forward(z_, x_, p_, sizes))

    # --- f32 MXU path: tight tolerance vs the pure-f32 reference ------------
    prep_f32 = prepare_decoder_params(params, sizes, mxu_dtype=jnp.float32)
    tu, tv, lu, lv, le, out_all = fwd(z, x, prep_f32)
    jax.block_until_ready(out_all)

    assert out_all.shape == (B, T_dfs, total_out)
    assert tu.shape == (B, T_dfs, time_size)
    assert le.shape == (B, T_dfs, edge_label_size)
    assert jnp.allclose(out_all, ref, atol=1e-4, rtol=1e-4)
    assert jnp.allclose(jnp.concatenate([tu, tv, lu, lv, le], axis=2), out_all)

    # --- bf16-MXU-operand path (f32 accumulation, f32 gate math): MXU-rate
    #     matmuls on v5e/v6e/v7x.  Looser tolerance from bf16 operand rounding.
    prep_bf16 = prepare_decoder_params(params, sizes, mxu_dtype=jnp.bfloat16)
    _, _, _, _, _, out_bf16 = fwd(z, x, prep_bf16)
    jax.block_until_ready(out_bf16)
    assert jnp.allclose(out_bf16, ref, atol=5e-2, rtol=5e-2)

    # TODO(synk): generate() (host-driven autoregressive sampling loop with
    # argmax feedback) is not implemented; only the training forward() is.
    # TODO(synk): for large B on v7x, add a leading batch grid axis marked
    # "parallel" so both TensorCores run independent halves of the recurrence.
    print("KERNEL_OK")
</pallas_src>

<mosaic_0001>
module attributes {stable_mosaic.version = 11 : i64} {
  func.func @_decoder_kernel(%arg0: i32, %arg1: memref<8x8x16xf32, #tpu.memory_space<vmem>>, %arg2: memref<16x128xf32, #tpu.memory_space<vmem>>, %arg3: memref<1x128xf32, #tpu.memory_space<vmem>>, %arg4: memref<32x128xf32, #tpu.memory_space<vmem>>, %arg5: memref<32x128xf32, #tpu.memory_space<vmem>>, %arg6: memref<1x128xf32, #tpu.memory_space<vmem>>, %arg7: memref<8x8x128xf32, #tpu.memory_space<vmem>>, %arg8: memref<8x8x128xf32, #tpu.memory_space<vmem>>, %arg9: memref<8x8x32xf32, #tpu.memory_space<vmem>>, %arg10: memref<8x32xf32, #tpu.memory_space<vmem>>, %arg11: memref<8x32xf32, #tpu.memory_space<vmem>>) attributes {dimension_semantics = [#tpu.dimension_semantics<arbitrary>], iteration_bounds = array<i64: 1>, scalar_prefetch = 0 : i64, scratch_operands = 4 : i64, tpu.core_type = #tpu.core_type<tc>, window_params = [{transform_indices = @transform_0, window_bounds = array<i64: 8, 8, 16>}, {pipeline_mode = #tpu.pipeline_mode<synchronous>, transform_indices = @transform_1, window_bounds = array<i64: 16, 128>}, {pipeline_mode = #tpu.pipeline_mode<synchronous>, transform_indices = @transform_2, window_bounds = array<i64: 1, 128>}, {pipeline_mode = #tpu.pipeline_mode<synchronous>, transform_indices = @transform_3, window_bounds = array<i64: 32, 128>}, {pipeline_mode = #tpu.pipeline_mode<synchronous>, transform_indices = @transform_4, window_bounds = array<i64: 32, 128>}, {pipeline_mode = #tpu.pipeline_mode<synchronous>, transform_indices = @transform_5, window_bounds = array<i64: 1, 128>}, {transform_indices = @transform_6, window_bounds = array<i64: 8, 8, 128>}]} {
    %c0_i32 = arith.constant 0 : i32
    %0 = arith.cmpi eq, %arg0, %c0_i32 : i32
    %1 = arith.extui %0 : i1 to i32
    %c0_i32_0 = arith.constant 0 : i32
    %2 = arith.cmpi ne, %1, %c0_i32_0 : i32
    scf.if %2 {
      %cst_94 = arith.constant 0.000000e+00 : f32
      %225 = vector.broadcast %cst_94 : f32 to vector<8x32xf32>
      %c0_95 = arith.constant 0 : index
      %c0_96 = arith.constant 0 : index
      %226 = vector.load %arg10[%c0_95, %c0_96] : memref<8x32xf32, #tpu.memory_space<vmem>>, vector<8x32xf32>
      tpu.vector_store %arg10[%c0_95, %c0_96], %225 {strides = array<i32>} : memref<8x32xf32, #tpu.memory_space<vmem>>, vector<8x32xf32>,
      %cst_97 = arith.constant 0.000000e+00 : f32
      %227 = vector.broadcast %cst_97 : f32 to vector<8x32xf32>
      %c0_98 = arith.constant 0 : index
      %c0_99 = arith.constant 0 : index
      %228 = vector.load %arg11[%c0_98, %c0_99] : memref<8x32xf32, #tpu.memory_space<vmem>>, vector<8x32xf32>
      tpu.vector_store %arg11[%c0_98, %c0_99], %227 {strides = array<i32>} : memref<8x32xf32, #tpu.memory_space<vmem>>, vector<8x32xf32>,
    } else {
    }
    %c0 = arith.constant 0 : index
    %c0_1 = arith.constant 0 : index
    %c0_2 = arith.constant 0 : index
    %3 = vector.load %arg1[%c0, %c0_1, %c0_2] : memref<8x8x16xf32, #tpu.memory_space<vmem>>, vector<8x8x16xf32>
    %4 = vector.shape_cast %3 : vector<8x8x16xf32> to vector<64x16xf32>
    %c0_3 = arith.constant 0 : index
    %c0_4 = arith.constant 0 : index
    %5 = vector.load %arg2[%c0_3, %c0_4] : memref<16x128xf32, #tpu.memory_space<vmem>>, vector<16x128xf32>
    %cst = arith.constant dense<0.000000e+00> : vector<64x128xf32>
    %6 = tpu.matmul %4, %5, %cst {dimension_numbers = #tpu.dot_dimension_numbers<[1], [0], [0], [1], [0, 0, 1, 1], [], []>} : vector<64x16xf32>, vector<16x128xf32>, vector<64x128xf32> -> vector<64x128xf32>
    %c0_5 = arith.constant 0 : index
    %c0_6 = arith.constant 0 : index
    %7 = vector.load %arg3[%c0_5, %c0_6] : memref<1x128xf32, #tpu.memory_space<vmem>>, vector<1x128xf32>
    %8 = vector.broadcast %7 : vector<1x128xf32> to vector<64x128xf32>
    %9 = arith.addf %6, %8 : vector<64x128xf32>
    %10 = vector.shape_cast %9 : vector<64x128xf32> to vector<8x8x128xf32>
    %c0_7 = arith.constant 0 : index
    %c0_8 = arith.constant 0 : index
    %c0_9 = arith.constant 0 : index
    %11 = vector.load %arg8[%c0_7, %c0_8, %c0_9] : memref<8x8x128xf32, #tpu.memory_space<vmem>>, vector<8x8x128xf32>
    tpu.vector_store %arg8[%c0_7, %c0_8, %c0_9], %10 {strides = array<i32>} : memref<8x8x128xf32, #tpu.memory_space<vmem>>, vector<8x8x128xf32>,
    %c0_10 = arith.constant 0 : index
    %c0_11 = arith.constant 0 : index
    %12 = vector.load %arg10[%c0_10, %c0_11] : memref<8x32xf32, #tpu.memory_space<vmem>>, vector<8x32xf32>
    %c0_12 = arith.constant 0 : index
    %c0_13 = arith.constant 0 : index
    %13 = vector.load %arg11[%c0_12, %c0_13] : memref<8x32xf32, #tpu.memory_space<vmem>>, vector<8x32xf32>
    %c0_i32_14 = arith.constant 0 : i32
    %14 = arith.index_cast %c0_i32_14 : i32 to index
    %c0_15 = arith.constant 0 : index
    %c0_16 = arith.constant 0 : index
    %15 = vector.load %arg8[%14, %c0_15, %c0_16] : memref<8x8x128xf32, #tpu.memory_space<vmem>>, vector<1x8x128xf32>
    %16 = vector.shape_cast %15 : vector<1x8x128xf32> to vector<8x128xf32>
    %c0_17 = arith.constant 0 : index
    %c0_18 = arith.constant 0 : index
    %17 = vector.load %arg4[%c0_17, %c0_18] : memref<32x128xf32, #tpu.memory_space<vmem>>, vector<32x128xf32>
    %cst_19 = arith.constant dense<0.000000e+00> : vector<8x128xf32>
    %18 = tpu.matmul %12, %17, %cst_19 {dimension_numbers = #tpu.dot_dimension_numbers<[1], [0], [0], [1], [0, 0, 1, 1], [], []>} : vector<8x32xf32>, vector<32x128xf32>, vector<8x128xf32> -> vector<8x128xf32>
    %19 = arith.addf %16, %18 : vector<8x128xf32>
    %20 = arith.negf %19 : vector<8x128xf32>
    %21 = math.exp %20 : vector<8x128xf32>
    %cst_20 = arith.constant 1.000000e+00 : f32
    %22 = vector.broadcast %cst_20 : f32 to vector<8x128xf32>
    %23 = arith.addf %22, %21 : vector<8x128xf32>
    %24 = arith.divf %22, %23 : vector<8x128xf32>
    %25 = math.tanh %19 : vector<8x128xf32>
    %26 = vector.extract_strided_slice %24 {offsets = [0, 0], sizes = [8, 32], strides = [1, 1]} : vector<8x128xf32> to vector<8x32xf32>
    %27 = vector.extract_strided_slice %24 {offsets = [0, 32], sizes = [8, 32], strides = [1, 1]} : vector<8x128xf32> to vector<8x32xf32>
    %28 = vector.extract_strided_slice %25 {offsets = [0, 64], sizes = [8, 32], strides = [1, 1]} : vector<8x128xf32> to vector<8x32xf32>
    %29 = vector.extract_strided_slice %24 {offsets = [0, 96], sizes = [8, 32], strides = [1, 1]} : vector<8x128xf32> to vector<8x32xf32>
    %30 = arith.mulf %27, %13 : vector<8x32xf32>
    %31 = arith.mulf %26, %28 : vector<8x32xf32>
    %32 = arith.addf %30, %31 : vector<8x32xf32>
    %33 = math.tanh %32 : vector<8x32xf32>
    %34 = arith.mulf %29, %33 : vector<8x32xf32>
    %35 = arith.index_cast %c0_i32_14 : i32 to index
    %c0_21 = arith.constant 0 : index
    %c0_22 = arith.constant 0 : index
    %36 = vector.load %arg9[%35, %c0_21, %c0_22] : memref<8x8x32xf32, #tpu.memory_space<vmem>>, vector<1x8x32xf32>
    %37 = vector.shape_cast %36 : vector<1x8x32xf32> to vector<8x32xf32>
    %38 = vector.shape_cast %34 : vector<8x32xf32> to vector<1x8x32xf32>
    tpu.vector_store %arg9[%35, %c0_21, %c0_22], %38 {strides = array<i32>} : memref<8x8x32xf32, #tpu.memory_space<vmem>>, vector<1x8x32xf32>,
    %c1_i32 = arith.constant 1 : i32
    %39 = arith.index_cast %c1_i32 : i32 to index
    %c0_23 = arith.constant 0 : index
    %c0_24 = arith.constant 0 : index
    %40 = vector.load %arg8[%39, %c0_23, %c0_24] : memref<8x8x128xf32, #tpu.memory_space<vmem>>, vector<1x8x128xf32>
    %41 = vector.shape_cast %40 : vector<1x8x128xf32> to vector<8x128xf32>
    %c0_25 = arith.constant 0 : index
    %c0_26 = arith.constant 0 : index
    %42 = vector.load %arg4[%c0_25, %c0_26] : memref<32x128xf32, #tpu.memory_space<vmem>>, vector<32x128xf32>
    %cst_27 = arith.constant dense<0.000000e+00> : vector<8x128xf32>
    %43 = tpu.matmul %34, %42, %cst_27 {dimension_numbers = #tpu.dot_dimension_numbers<[1], [0], [0], [1], [0, 0, 1, 1], [], []>} : vector<8x32xf32>, vector<32x128xf32>, vector<8x128xf32> -> vector<8x128xf32>
    %44 = arith.addf %41, %43 : vector<8x128xf32>
    %45 = arith.negf %44 : vector<8x128xf32>
    %46 = math.exp %45 : vector<8x128xf32>
    %cst_28 = arith.constant 1.000000e+00 : f32
    %47 = vector.broadcast %cst_28 : f32 to vector<8x128xf32>
    %48 = arith.addf %47, %46 : vector<8x128xf32>
    %49 = arith.divf %47, %48 : vector<8x128xf32>
    %50 = math.tanh %44 : vector<8x128xf32>
    %51 = vector.extract_strided_slice %49 {offsets = [0, 0], sizes = [8, 32], strides = [1, 1]} : vector<8x128xf32> to vector<8x32xf32>
    %52 = vector.extract_strided_slice %49 {offsets = [0, 32], sizes = [8, 32], strides = [1, 1]} : vector<8x128xf32> to vector<8x32xf32>
    %53 = vector.extract_strided_slice %50 {offsets = [0, 64], sizes = [8, 32], strides = [1, 1]} : vector<8x128xf32> to vector<8x32xf32>
    %54 = vector.extract_strided_slice %49 {offsets = [0, 96], sizes = [8, 32], strides = [1, 1]} : vector<8x128xf32> to vector<8x32xf32>
    %55 = arith.mulf %52, %32 : vector<8x32xf32>
    %56 = arith.mulf %51, %53 : vector<8x32xf32>
    %57 = arith.addf %55, %56 : vector<8x32xf32>
    %58 = math.tanh %57 : vector<8x32xf32>
    %59 = arith.mulf %54, %58 : vector<8x32xf32>
    %60 = arith.index_cast %c1_i32 : i32 to index
    %c0_29 = arith.constant 0 : index
    %c0_30 = arith.constant 0 : index
    %61 = vector.load %arg9[%60, %c0_29, %c0_30] : memref<8x8x32xf32, #tpu.memory_space<vmem>>, vector<1x8x32xf32>
    %62 = vector.shape_cast %61 : vector<1x8x32xf32> to vector<8x32xf32>
    %63 = vector.shape_cast %59 : vector<8x32xf32> to vector<1x8x32xf32>
    tpu.vector_store %arg9[%60, %c0_29, %c0_30], %63 {strides = array<i32>} : memref<8x8x32xf32, #tpu.memory_space<vmem>>, vector<1x8x32xf32>,
    %c2_i32 = arith.constant 2 : i32
    %64 = arith.index_cast %c2_i32 : i32 to index
    %c0_31 = arith.constant 0 : index
    %c0_32 = arith.constant 0 : index
    %65 = vector.load %arg8[%64, %c0_31, %c0_32] : memref<8x8x128xf32, #tpu.memory_space<vmem>>, vector<1x8x128xf32>
    %66 = vector.shape_cast %65 : vector<1x8x128xf32> to vector<8x128xf32>
    %c0_33 = arith.constant 0 : index
    %c0_34 = arith.constant 0 : index
    %67 = vector.load %arg4[%c0_33, %c0_34] : memref<32x128xf32, #tpu.memory_space<vmem>>, vector<32x128xf32>
    %cst_35 = arith.constant dense<0.000000e+00> : vector<8x128xf32>
    %68 = tpu.matmul %59, %67, %cst_35 {dimension_numbers = #tpu.dot_dimension_numbers<[1], [0], [0], [1], [0, 0, 1, 1], [], []>} : vector<8x32xf32>, vector<32x128xf32>, vector<8x128xf32> -> vector<8x128xf32>
    %69 = arith.addf %66, %68 : vector<8x128xf32>
    %70 = arith.negf %69 : vector<8x128xf32>
    %71 = math.exp %70 : vector<8x128xf32>
    %cst_36 = arith.constant 1.000000e+00 : f32
    %72 = vector.broadcast %cst_36 : f32 to vector<8x128xf32>
    %73 = arith.addf %72, %71 : vector<8x128xf32>
    %74 = arith.divf %72, %73 : vector<8x128xf32>
    %75 = math.tanh %69 : vector<8x128xf32>
    %76 = vector.extract_strided_slice %74 {offsets = [0, 0], sizes = [8, 32], strides = [1, 1]} : vector<8x128xf32> to vector<8x32xf32>
    %77 = vector.extract_strided_slice %74 {offsets = [0, 32], sizes = [8, 32], strides = [1, 1]} : vector<8x128xf32> to vector<8x32xf32>
    %78 = vector.extract_strided_slice %75 {offsets = [0, 64], sizes = [8, 32], strides = [1, 1]} : vector<8x128xf32> to vector<8x32xf32>
    %79 = vector.extract_strided_slice %74 {offsets = [0, 96], sizes = [8, 32], strides = [1, 1]} : vector<8x128xf32> to vector<8x32xf32>
    %80 = arith.mulf %77, %57 : vector<8x32xf32>
    %81 = arith.mulf %76, %78 : vector<8x32xf32>
    %82 = arith.addf %80, %81 : vector<8x32xf32>
    %83 = math.tanh %82 : vector<8x32xf32>
    %84 = arith.mulf %79, %83 : vector<8x32xf32>
    %85 = arith.index_cast %c2_i32 : i32 to index
    %c0_37 = arith.constant 0 : index
    %c0_38 = arith.constant 0 : index
    %86 = vector.load %arg9[%85, %c0_37, %c0_38] : memref<8x8x32xf32, #tpu.memory_space<vmem>>, vector<1x8x32xf32>
    %87 = vector.shape_cast %86 : vector<1x8x32xf32> to vector<8x32xf32>
    %88 = vector.shape_cast %84 : vector<8x32xf32> to vector<1x8x32xf32>
    tpu.vector_store %arg9[%85, %c0_37, %c0_38], %88 {strides = array<i32>} : memref<8x8x32xf32, #tpu.memory_space<vmem>>, vector<1x8x32xf32>,
    %c3_i32 = arith.constant 3 : i32
    %89 = arith.index_cast %c3_i32 : i32 to index
    %c0_39 = arith.constant 0 : index
    %c0_40 = arith.constant 0 : index
    %90 = vector.load %arg8[%89, %c0_39, %c0_40] : memref<8x8x128xf32, #tpu.memory_space<vmem>>, vector<1x8x128xf32>
    %91 = vector.shape_cast %90 : vector<1x8x128xf32> to vector<8x128xf32>
    %c0_41 = arith.constant 0 : index
    %c0_42 = arith.constant 0 : index
    %92 = vector.load %arg4[%c0_41, %c0_42] : memref<32x128xf32, #tpu.memory_space<vmem>>, vector<32x128xf32>
    %cst_43 = arith.constant dense<0.000000e+00> : vector<8x128xf32>
    %93 = tpu.matmul %84, %92, %cst_43 {dimension_numbers = #tpu.dot_dimension_numbers<[1], [0], [0], [1], [0, 0, 1, 1], [], []>} : vector<8x32xf32>, vector<32x128xf32>, vector<8x128xf32> -> vector<8x128xf32>
    %94 = arith.addf %91, %93 : vector<8x128xf32>
    %95 = arith.negf %94 : vector<8x128xf32>
    %96 = math.exp %95 : vector<8x128xf32>
    %cst_44 = arith.constant 1.000000e+00 : f32
    %97 = vector.broadcast %cst_44 : f32 to vector<8x128xf32>
    %98 = arith.addf %97, %96 : vector<8x128xf32>
    %99 = arith.divf %97, %98 : vector<8x128xf32>
    %100 = math.tanh %94 : vector<8x128xf32>
    %101 = vector.extract_strided_slice %99 {offsets = [0, 0], sizes = [8, 32], strides = [1, 1]} : vector<8x128xf32> to vector<8x32xf32>
    %102 = vector.extract_strided_slice %99 {offsets = [0, 32], sizes = [8, 32], strides = [1, 1]} : vector<8x128xf32> to vector<8x32xf32>
    %103 = vector.extract_strided_slice %100 {offsets = [0, 64], sizes = [8, 32], strides = [1, 1]} : vector<8x128xf32> to vector<8x32xf32>
    %104 = vector.extract_strided_slice %99 {offsets = [0, 96], sizes = [8, 32], strides = [1, 1]} : vector<8x128xf32> to vector<8x32xf32>
    %105 = arith.mulf %102, %82 : vector<8x32xf32>
    %106 = arith.mulf %101, %103 : vector<8x32xf32>
    %107 = arith.addf %105, %106 : vector<8x32xf32>
    %108 = math.tanh %107 : vector<8x32xf32>
    %109 = arith.mulf %104, %108 : vector<8x32xf32>
    %110 = arith.index_cast %c3_i32 : i32 to index
    %c0_45 = arith.constant 0 : index
    %c0_46 = arith.constant 0 : index
    %111 = vector.load %arg9[%110, %c0_45, %c0_46] : memref<8x8x32xf32, #tpu.memory_space<vmem>>, vector<1x8x32xf32>
    %112 = vector.shape_cast %111 : vector<1x8x32xf32> to vector<8x32xf32>
    %113 = vector.shape_cast %109 : vector<8x32xf32> to vector<1x8x32xf32>
    tpu.vector_store %arg9[%110, %c0_45, %c0_46], %113 {strides = array<i32>} : memref<8x8x32xf32, #tpu.memory_space<vmem>>, vector<1x8x32xf32>,
    %c4_i32 = arith.constant 4 : i32
    %114 = arith.index_cast %c4_i32 : i32 to index
    %c0_47 = arith.constant 0 : index
    %c0_48 = arith.constant 0 : index
    %115 = vector.load %arg8[%114, %c0_47, %c0_48] : memref<8x8x128xf32, #tpu.memory_space<vmem>>, vector<1x8x128xf32>
    %116 = vector.shape_cast %115 : vector<1x8x128xf32> to vector<8x128xf32>
    %c0_49 = arith.constant 0 : index
    %c0_50 = arith.constant 0 : index
    %117 = vector.load %arg4[%c0_49, %c0_50] : memref<32x128xf32, #tpu.memory_space<vmem>>, vector<32x128xf32>
    %cst_51 = arith.constant dense<0.000000e+00> : vector<8x128xf32>
    %118 = tpu.matmul %109, %117, %cst_51 {dimension_numbers = #tpu.dot_dimension_numbers<[1], [0], [0], [1], [0, 0, 1, 1], [], []>} : vector<8x32xf32>, vector<32x128xf32>, vector<8x128xf32> -> vector<8x128xf32>
    %119 = arith.addf %116, %118 : vector<8x128xf32>
    %120 = arith.negf %119 : vector<8x128xf32>
    %121 = math.exp %120 : vector<8x128xf32>
    %cst_52 = arith.constant 1.000000e+00 : f32
    %122 = vector.broadcast %cst_52 : f32 to vector<8x128xf32>
    %123 = arith.addf %122, %121 : vector<8x128xf32>
    %124 = arith.divf %122, %123 : vector<8x128xf32>
    %125 = math.tanh %119 : vector<8x128xf32>
    %126 = vector.extract_strided_slice %124 {offsets = [0, 0], sizes = [8, 32], strides = [1, 1]} : vector<8x128xf32> to vector<8x32xf32>
    %127 = vector.extract_strided_slice %124 {offsets = [0, 32], sizes = [8, 32], strides = [1, 1]} : vector<8x128xf32> to vector<8x32xf32>
    %128 = vector.extract_strided_slice %125 {offsets = [0, 64], sizes = [8, 32], strides = [1, 1]} : vector<8x128xf32> to vector<8x32xf32>
    %129 = vector.extract_strided_slice %124 {offsets = [0, 96], sizes = [8, 32], strides = [1, 1]} : vector<8x128xf32> to vector<8x32xf32>
    %130 = arith.mulf %127, %107 : vector<8x32xf32>
    %131 = arith.mulf %126, %128 : vector<8x32xf32>
    %132 = arith.addf %130, %131 : vector<8x32xf32>
    %133 = math.tanh %132 : vector<8x32xf32>
    %134 = arith.mulf %129, %133 : vector<8x32xf32>
    %135 = arith.index_cast %c4_i32 : i32 to index
    %c0_53 = arith.constant 0 : index
    %c0_54 = arith.constant 0 : index
    %136 = vector.load %arg9[%135, %c0_53, %c0_54] : memref<8x8x32xf32, #tpu.memory_space<vmem>>, vector<1x8x32xf32>
    %137 = vector.shape_cast %136 : vector<1x8x32xf32> to vector<8x32xf32>
    %138 = vector.shape_cast %134 : vector<8x32xf32> to vector<1x8x32xf32>
    tpu.vector_store %arg9[%135, %c0_53, %c0_54], %138 {strides = array<i32>} : memref<8x8x32xf32, #tpu.memory_space<vmem>>, vector<1x8x32xf32>,
    %c5_i32 = arith.constant 5 : i32
    %139 = arith.index_cast %c5_i32 : i32 to index
    %c0_55 = arith.constant 0 : index
    %c0_56 = arith.constant 0 : index
    %140 = vector.load %arg8[%139, %c0_55, %c0_56] : memref<8x8x128xf32, #tpu.memory_space<vmem>>, vector<1x8x128xf32>
    %141 = vector.shape_cast %140 : vector<1x8x128xf32> to vector<8x128xf32>
    %c0_57 = arith.constant 0 : index
    %c0_58 = arith.constant 0 : index
    %142 = vector.load %arg4[%c0_57, %c0_58] : memref<32x128xf32, #tpu.memory_space<vmem>>, vector<32x128xf32>
    %cst_59 = arith.constant dense<0.000000e+00> : vector<8x128xf32>
    %143 = tpu.matmul %134, %142, %cst_59 {dimension_numbers = #tpu.dot_dimension_numbers<[1], [0], [0], [1], [0, 0, 1, 1], [], []>} : vector<8x32xf32>, vector<32x128xf32>, vector<8x128xf32> -> vector<8x128xf32>
    %144 = arith.addf %141, %143 : vector<8x128xf32>
    %145 = arith.negf %144 : vector<8x128xf32>
    %146 = math.exp %145 : vector<8x128xf32>
    %cst_60 = arith.constant 1.000000e+00 : f32
    %147 = vector.broadcast %cst_60 : f32 to vector<8x128xf32>
    %148 = arith.addf %147, %146 : vector<8x128xf32>
    %149 = arith.divf %147, %148 : vector<8x128xf32>
    %150 = math.tanh %144 : vector<8x128xf32>
    %151 = vector.extract_strided_slice %149 {offsets = [0, 0], sizes = [8, 32], strides = [1, 1]} : vector<8x128xf32> to vector<8x32xf32>
    %152 = vector.extract_strided_slice %149 {offsets = [0, 32], sizes = [8, 32], strides = [1, 1]} : vector<8x128xf32> to vector<8x32xf32>
    %153 = vector.extract_strided_slice %150 {offsets = [0, 64], sizes = [8, 32], strides = [1, 1]} : vector<8x128xf32> to vector<8x32xf32>
    %154 = vector.extract_strided_slice %149 {offsets = [0, 96], sizes = [8, 32], strides = [1, 1]} : vector<8x128xf32> to vector<8x32xf32>
    %155 = arith.mulf %152, %132 : vector<8x32xf32>
    %156 = arith.mulf %151, %153 : vector<8x32xf32>
    %157 = arith.addf %155, %156 : vector<8x32xf32>
    %158 = math.tanh %157 : vector<8x32xf32>
    %159 = arith.mulf %154, %158 : vector<8x32xf32>
    %160 = arith.index_cast %c5_i32 : i32 to index
    %c0_61 = arith.constant 0 : index
    %c0_62 = arith.constant 0 : index
    %161 = vector.load %arg9[%160, %c0_61, %c0_62] : memref<8x8x32xf32, #tpu.memory_space<vmem>>, vector<1x8x32xf32>
    %162 = vector.shape_cast %161 : vector<1x8x32xf32> to vector<8x32xf32>
    %163 = vector.shape_cast %159 : vector<8x32xf32> to vector<1x8x32xf32>
    tpu.vector_store %arg9[%160, %c0_61, %c0_62], %163 {strides = array<i32>} : memref<8x8x32xf32, #tpu.memory_space<vmem>>, vector<1x8x32xf32>,
    %c6_i32 = arith.constant 6 : i32
    %164 = arith.index_cast %c6_i32 : i32 to index
    %c0_63 = arith.constant 0 : index
    %c0_64 = arith.constant 0 : index
    %165 = vector.load %arg8[%164, %c0_63, %c0_64] : memref<8x8x128xf32, #tpu.memory_space<vmem>>, vector<1x8x128xf32>
    %166 = vector.shape_cast %165 : vector<1x8x128xf32> to vector<8x128xf32>
    %c0_65 = arith.constant 0 : index
    %c0_66 = arith.constant 0 : index
    %167 = vector.load %arg4[%c0_65, %c0_66] : memref<32x128xf32, #tpu.memory_space<vmem>>, vector<32x128xf32>
    %cst_67 = arith.constant dense<0.000000e+00> : vector<8x128xf32>
    %168 = tpu.matmul %159, %167, %cst_67 {dimension_numbers = #tpu.dot_dimension_numbers<[1], [0], [0], [1], [0, 0, 1, 1], [], []>} : vector<8x32xf32>, vector<32x128xf32>, vector<8x128xf32> -> vector<8x128xf32>
    %169 = arith.addf %166, %168 : vector<8x128xf32>
    %170 = arith.negf %169 : vector<8x128xf32>
    %171 = math.exp %170 : vector<8x128xf32>
    %cst_68 = arith.constant 1.000000e+00 : f32
    %172 = vector.broadcast %cst_68 : f32 to vector<8x128xf32>
    %173 = arith.addf %172, %171 : vector<8x128xf32>
    %174 = arith.divf %172, %173 : vector<8x128xf32>
    %175 = math.tanh %169 : vector<8x128xf32>
    %176 = vector.extract_strided_slice %174 {offsets = [0, 0], sizes = [8, 32], strides = [1, 1]} : vector<8x128xf32> to vector<8x32xf32>
    %177 = vector.extract_strided_slice %174 {offsets = [0, 32], sizes = [8, 32], strides = [1, 1]} : vector<8x128xf32> to vector<8x32xf32>
    %178 = vector.extract_strided_slice %175 {offsets = [0, 64], sizes = [8, 32], strides = [1, 1]} : vector<8x128xf32> to vector<8x32xf32>
    %179 = vector.extract_strided_slice %174 {offsets = [0, 96], sizes = [8, 32], strides = [1, 1]} : vector<8x128xf32> to vector<8x32xf32>
    %180 = arith.mulf %177, %157 : vector<8x32xf32>
    %181 = arith.mulf %176, %178 : vector<8x32xf32>
    %182 = arith.addf %180, %181 : vector<8x32xf32>
    %183 = math.tanh %182 : vector<8x32xf32>
    %184 = arith.mulf %179, %183 : vector<8x32xf32>
    %185 = arith.index_cast %c6_i32 : i32 to index
    %c0_69 = arith.constant 0 : index
    %c0_70 = arith.constant 0 : index
    %186 = vector.load %arg9[%185, %c0_69, %c0_70] : memref<8x8x32xf32, #tpu.memory_space<vmem>>, vector<1x8x32xf32>
    %187 = vector.shape_cast %186 : vector<1x8x32xf32> to vector<8x32xf32>
    %188 = vector.shape_cast %184 : vector<8x32xf32> to vector<1x8x32xf32>
    tpu.vector_store %arg9[%185, %c0_69, %c0_70], %188 {strides = array<i32>} : memref<8x8x32xf32, #tpu.memory_space<vmem>>, vector<1x8x32xf32>,
    %c7_i32 = arith.constant 7 : i32
    %189 = arith.index_cast %c7_i32 : i32 to index
    %c0_71 = arith.constant 0 : index
    %c0_72 = arith.constant 0 : index
    %190 = vector.load %arg8[%189, %c0_71, %c0_72] : memref<8x8x128xf32, #tpu.memory_space<vmem>>, vector<1x8x128xf32>
    %191 = vector.shape_cast %190 : vector<1x8x128xf32> to vector<8x128xf32>
    %c0_73 = arith.constant 0 : index
    %c0_74 = arith.constant 0 : index
    %192 = vector.load %arg4[%c0_73, %c0_74] : memref<32x128xf32, #tpu.memory_space<vmem>>, vector<32x128xf32>
    %cst_75 = arith.constant dense<0.000000e+00> : vector<8x128xf32>
    %193 = tpu.matmul %184, %192, %cst_75 {dimension_numbers = #tpu.dot_dimension_numbers<[1], [0], [0], [1], [0, 0, 1, 1], [], []>} : vector<8x32xf32>, vector<32x128xf32>, vector<8x128xf32> -> vector<8x128xf32>
    %194 = arith.addf %191, %193 : vector<8x128xf32>
    %195 = arith.negf %194 : vector<8x128xf32>
    %196 = math.exp %195 : vector<8x128xf32>
    %cst_76 = arith.constant 1.000000e+00 : f32
    %197 = vector.broadcast %cst_76 : f32 to vector<8x128xf32>
    %198 = arith.addf %197, %196 : vector<8x128xf32>
    %199 = arith.divf %197, %198 : vector<8x128xf32>
    %200 = math.tanh %194 : vector<8x128xf32>
    %201 = vector.extract_strided_slice %199 {offsets = [0, 0], sizes = [8, 32], strides = [1, 1]} : vector<8x128xf32> to vector<8x32xf32>
    %202 = vector.extract_strided_slice %199 {offsets = [0, 32], sizes = [8, 32], strides = [1, 1]} : vector<8x128xf32> to vector<8x32xf32>
    %203 = vector.extract_strided_slice %200 {offsets = [0, 64], sizes = [8, 32], strides = [1, 1]} : vector<8x128xf32> to vector<8x32xf32>
    %204 = vector.extract_strided_slice %199 {offsets = [0, 96], sizes = [8, 32], strides = [1, 1]} : vector<8x128xf32> to vector<8x32xf32>
    %205 = arith.mulf %202, %182 : vector<8x32xf32>
    %206 = arith.mulf %201, %203 : vector<8x32xf32>
    %207 = arith.addf %205, %206 : vector<8x32xf32>
    %208 = math.tanh %207 : vector<8x32xf32>
    %209 = arith.mulf %204, %208 : vector<8x32xf32>
    %210 = arith.index_cast %c7_i32 : i32 to index
    %c0_77 = arith.constant 0 : index
    %c0_78 = arith.constant 0 : index
    %211 = vector.load %arg9[%210, %c0_77, %c0_78] : memref<8x8x32xf32, #tpu.memory_space<vmem>>, vector<1x8x32xf32>
    %212 = vector.shape_cast %211 : vector<1x8x32xf32> to vector<8x32xf32>
    %213 = vector.shape_cast %209 : vector<8x32xf32> to vector<1x8x32xf32>
    tpu.vector_store %arg9[%210, %c0_77, %c0_78], %213 {strides = array<i32>} : memref<8x8x32xf32, #tpu.memory_space<vmem>>, vector<1x8x32xf32>,
    %c8_i32 = arith.constant 8 : i32
    %c0_79 = arith.constant 0 : index
    %c0_80 = arith.constant 0 : index
    %214 = vector.load %arg10[%c0_79, %c0_80] : memref<8x32xf32, #tpu.memory_space<vmem>>, vector<8x32xf32>
    tpu.vector_store %arg10[%c0_79, %c0_80], %209 {strides = array<i32>} : memref<8x32xf32, #tpu.memory_space<vmem>>, vector<8x32xf32>,
    %c0_81 = arith.constant 0 : index
    %c0_82 = arith.constant 0 : index
    %215 = vector.load %arg11[%c0_81, %c0_82] : memref<8x32xf32, #tpu.memory_space<vmem>>, vector<8x32xf32>
    tpu.vector_store %arg11[%c0_81, %c0_82], %207 {strides = array<i32>} : memref<8x32xf32, #tpu.memory_space<vmem>>, vector<8x32xf32>,
    %c0_83 = arith.constant 0 : index
    %c0_84 = arith.constant 0 : index
    %c0_85 = arith.constant 0 : index
    %216 = vector.load %arg9[%c0_83, %c0_84, %c0_85] : memref<8x8x32xf32, #tpu.memory_space<vmem>>, vector<8x8x32xf32>
    %217 = vector.shape_cast %216 : vector<8x8x32xf32> to vector<64x32xf32>
    %c0_86 = arith.constant 0 : index
    %c0_87 = arith.constant 0 : index
    %218 = vector.load %arg5[%c0_86, %c0_87] : memref<32x128xf32, #tpu.memory_space<vmem>>, vector<32x128xf32>
    %cst_88 = arith.constant dense<0.000000e+00> : vector<64x128xf32>
    %219 = tpu.matmul %217, %218, %cst_88 {dimension_numbers = #tpu.dot_dimension_numbers<[1], [0], [0], [1], [0, 0, 1, 1], [], []>} : vector<64x32xf32>, vector<32x128xf32>, vector<64x128xf32> -> vector<64x128xf32>
    %c0_89 = arith.constant 0 : index
    %c0_90 = arith.constant 0 : index
    %220 = vector.load %arg6[%c0_89, %c0_90] : memref<1x128xf32, #tpu.memory_space<vmem>>, vector<1x128xf32>
    %221 = vector.broadcast %220 : vector<1x128xf32> to vector<64x128xf32>
    %222 = arith.addf %219, %221 : vector<64x128xf32>
    %223 = vector.shape_cast %222 : vector<64x128xf32> to vector<8x8x128xf32>
    %c0_91 = arith.constant 0 : index
    %c0_92 = arith.constant 0 : index
    %c0_93 = arith.constant 0 : index
    %224 = vector.load %arg7[%c0_91, %c0_92, %c0_93] : memref<8x8x128xf32, #tpu.memory_space<vmem>>, vector<8x8x128xf32>
    tpu.vector_store %arg7[%c0_91, %c0_92, %c0_93], %223 {strides = array<i32>} : memref<8x8x128xf32, #tpu.memory_space<vmem>>, vector<8x8x128xf32>,
    return
  }
  func.func @transform_0(%arg0: i32) -> (i32, i32, i32) {
    %c0_i32 = arith.constant 0 : i32
    %c0_i32_0 = arith.constant 0 : i32
    %c0_i32_1 = arith.constant 0 : i32
    return %arg0, %c0_i32, %c0_i32_0 : i32, i32, i32
  }
  func.func @transform_1(%arg0: i32) -> (i32, i32) {
    %c0_i32 = arith.constant 0 : i32
    %c0_i32_0 = arith.constant 0 : i32
    %c0_i32_1 = arith.constant 0 : i32
    return %c0_i32, %c0_i32_0 : i32, i32
  }
  func.func @transform_2(%arg0: i32) -> (i32, i32) {
    %c0_i32 = arith.constant 0 : i32
    %c0_i32_0 = arith.constant 0 : i32
    %c0_i32_1 = arith.constant 0 : i32
    return %c0_i32, %c0_i32_0 : i32, i32
  }
  func.func @transform_3(%arg0: i32) -> (i32, i32) {
    %c0_i32 = arith.constant 0 : i32
    %c0_i32_0 = arith.constant 0 : i32
    %c0_i32_1 = arith.constant 0 : i32
    return %c0_i32, %c0_i32_0 : i32, i32
  }
  func.func @transform_4(%arg0: i32) -> (i32, i32) {
    %c0_i32 = arith.constant 0 : i32
    %c0_i32_0 = arith.constant 0 : i32
    %c0_i32_1 = arith.constant 0 : i32
    return %c0_i32, %c0_i32_0 : i32, i32
  }
  func.func @transform_5(%arg0: i32) -> (i32, i32) {
    %c0_i32 = arith.constant 0 : i32
    %c0_i32_0 = arith.constant 0 : i32
    %c0_i32_1 = arith.constant 0 : i32
    return %c0_i32, %c0_i32_0 : i32, i32
  }
  func.func @transform_6(%arg0: i32) -> (i32, i32, i32) {
    %c0_i32 = arith.constant 0 : i32
    %c0_i32_0 = arith.constant 0 : i32
    %c0_i32_1 = arith.constant 0 : i32
    return %arg0, %c0_i32, %c0_i32_0 : i32, i32, i32
  }
}

</mosaic_0001>

<llo_original>
// kernel: _lambda_.1
$region0: #{_lambda_.1}
  #allocation0 [shape = 'u32[]', space=smem, size = 0x4, offset = 0x4, fixed_abs, tag = 'smem constant byte address 0x4 - core index']
  #allocation1 [shape = 'u32[144,128]{1,0:T(1,128)}', space=vmem, size = 0x12000, scoped, tag = 'internal scratch']
  #allocation2 [shape = 'f32[8,8,128]{2,1,0:T(8,128)}', space=vmem, size = 0x8000, scoped, tag = 'scratch operand']
  #allocation3 [shape = 'f32[8,8,32]{2,1,0:T(8,128)}', space=vmem, size = 0x8000, scoped, tag = 'scratch operand']
  #allocation4 [shape = 'f32[8,32]{1,0:T(8,128)}', space=vmem, size = 0x1000, scoped, tag = 'scratch operand']
  #allocation5 [shape = 'f32[8,32]{1,0:T(8,128)}', space=vmem, size = 0x1000, scoped, tag = 'scratch operand']
  %s0 = inlined_call_operand.vmem [shape: f32[8,8,16], index: 0, kind: input, shape index: {}]
  %s1 = inlined_call_operand.vmem [shape: f32[16,128], index: 1, kind: input, shape index: {}]
  %s2 = inlined_call_operand.vmem [shape: f32[1,128], index: 2, kind: input, shape index: {}]
  %s3 = inlined_call_operand.vmem [shape: f32[32,128], index: 3, kind: input, shape index: {}]
  %s4 = inlined_call_operand.vmem [shape: f32[32,128], index: 4, kind: input, shape index: {}]
  %s5 = inlined_call_operand.vmem [shape: f32[1,128], index: 5, kind: input, shape index: {}]
  %s6 = inlined_call_operand.vmem [shape: f32[8,8,128], index: 6, kind: output, shape index: {}]
  %s7 = sld [smem:[#allocation0]]
  $region38: #{_lambda_.1} parent=0
    _
  %s9 = ssub.s32 1, %s7
  %s10 = scalar_select 0, %s9, %s7
  // Predicated region
  $region2: #{_lambda_.1} parent=0 // pred_check
    _
  $region3: #{_lambda_.1} parent=0 // pred_check_branch
    %12 = sbr.rel (0) target = $region5
  $region4: #{_lambda_.1} parent=0 // pred_region
    _
  $region5: #{_lambda_.1} parent=0 // pred_fallthru
    _
  // Predicated region
  $region6: #{_lambda_.1} parent=0 // pred_check
    _
  $region7: #{_lambda_.1} parent=0 // pred_check_branch
    %14 = sbr.rel (0) target = $region9
  $region8: #{_lambda_.1} parent=0 // pred_region
    _
  $region9: #{_lambda_.1} parent=0 // pred_fallthru
    _
  // Predicated region
  $region10: #{_lambda_.1} parent=0 // pred_check
    _
  $region11: #{_lambda_.1} parent=0 // pred_check_branch
    %16 = sbr.rel (0) target = $region13
  $region12: #{_lambda_.1} parent=0 // pred_region
    _
  $region13: #{_lambda_.1} parent=0 // pred_fallthru
    _
  // Predicated region
  $region14: #{_lambda_.1} parent=0 // pred_check
    _
  $region15: #{_lambda_.1} parent=0 // pred_check_branch
    %18 = sbr.rel (0) target = $region17
  $region16: #{_lambda_.1} parent=0 // pred_region
    _
  $region17: #{_lambda_.1} parent=0 // pred_fallthru
    _
  // Predicated region
  $region18: #{_lambda_.1} parent=0 // pred_check
    _
  $region19: #{_lambda_.1} parent=0 // pred_check_branch
    %20 = sbr.rel (0) target = $region21
  $region20: #{_lambda_.1} parent=0 // pred_region
    _
  $region21: #{_lambda_.1} parent=0 // pred_fallthru
    _
  // Predicated region
  $region22: #{_lambda_.1} parent=0 // pred_check
    _
  $region23: #{_lambda_.1} parent=0 // pred_check_branch
    %22 = sbr.rel (0) target = $region25
  $region24: #{_lambda_.1} parent=0 // pred_region
    _
  $region25: #{_lambda_.1} parent=0 // pred_fallthru
    _
  %p23 = scmp.eq.s32.totalorder 0, 0
  // Predicated region
  $region26: #{_lambda_.1} parent=0 // pred_check
    %p24 = pneg %p23
  $region27: #{_lambda_.1} parent=0 // pred_check_branch
    %26 = sbr.rel (%p24) target = $region29
  $region28: #{_lambda_.1} parent=0 // pred_region
    %vm27 = vcmask 261120
    %28 = vst.msk [vmem:[#allocation4] sm:$0xff] %vm27, 0.0
    %29 = vst.msk [vmem:[#allocation5] sm:$0xff] %vm27, 0.0
  $region29: #{_lambda_.1} parent=0 // pred_fallthru
    _
  %v30 = vld [vmem:[%s0] sm:$0xff]
  %v31 = vld [vmem:[%s0 + $0x8] sm:$0xff]
  %v32 = vld [vmem:[%s0 + $0x10] sm:$0xff]
  %v33 = vld [vmem:[%s0 + $0x18] sm:$0xff]
  %v34 = vld [vmem:[%s0 + $0x20] sm:$0xff]
  %v35 = vld [vmem:[%s0 + $0x28] sm:$0xff]
  %v36 = vld [vmem:[%s0 + $0x30] sm:$0xff]
  %v37 = vld [vmem:[%s0 + $0x38] sm:$0xff]
  %v38 = vld [vmem:[%s1] sm:$0xff]
  %v39 = vld [vmem:[%s1 + $0x8] sm:$0xff]
  %v40 = vld [vmem:[%s2] sm:$0x1]
  %v42 = vlaneseq
  %v43 = vshrl.u32 %v42, 7
  %v44 = vsub.s32 0, %v43
  %v45 = vrot.slane %v40, %v44
  %vm47 = vcmask 130048
  %v49 = vsel %vm47, %v30, 0
  %v52 = vsel %vm47, %v31, 0
  %v55 = vsel %vm47, %v32, 0
  %v58 = vsel %vm47, %v33, 0
  %v61 = vsel %vm47, %v34, 0
  %v64 = vsel %vm47, %v35, 0
  %v67 = vsel %vm47, %v36, 0
  %v70 = vsel %vm47, %v37, 0
  %72 = vmatprep.subr.mxu0 0.0
  %73 = vmatpush1.msra.mxu0 %v38
  %74 = vmatprep.subr.mxu0 0.0
  %75 = vmatpush1.msra.mxu0 %v39
  %76 = vmatprep.subr.mxu0 0.0
  %77 = vmatpush1.msra.mxu0 0.0
  %78 = vmatprep.subr.mxu0 0.0
  %79 = vmatpush1.msra.mxu0 0.0
  %80 = vmatprep.subr.mxu0 0.0
  %81 = vmatpush1.msra.mxu0 0.0
  %82 = vmatprep.subr.mxu0 0.0
  %83 = vmatpush1.msra.mxu0 0.0
  %84 = vmatprep.subr.mxu0 0.0
  %85 = vmatpush1.msra.mxu0 0.0
  %86 = vmatprep.subr.mxu0 0.0
  %87 = vmatpush1.msra.mxu0 0.0
  %88 = vmatprep.subr.mxu0 0.0
  %89 = vmatpush1.msra.mxu0 0.0
  %90 = vmatprep.subr.mxu0 0.0
  %91 = vmatpush1.msra.mxu0 0.0
  %92 = vmatprep.subr.mxu0 0.0
  %93 = vmatpush1.msra.mxu0 0.0
  %94 = vmatprep.subr.mxu0 0.0
  %95 = vmatpush1.msra.mxu0 0.0
  %96 = vmatprep.subr.mxu0 0.0
  %97 = vmatpush1.msra.mxu0 0.0
  %98 = vmatprep.subr.mxu0 0.0
  %99 = vmatpush1.msra.mxu0 0.0
  %100 = vmatprep.subr.mxu0 0.0
  %101 = vmatpush1.msra.mxu0 0.0
  %102 = vmatprep.subr.mxu0 0.0
  %103 = vmatpush1.msra.mxu0 0.0
  %104 = vmatprep.subr.mxu0 0.0
  %105 = vmatpush1.msra.mxu0 0.0
  %106 = vmatprep.subr.mxu0 0.0
  %107 = vmatpush1.msra.mxu0 0.0
  %108 = vmatprep.subr.mxu0 0.0
  %109 = vmatpush1.msra.mxu0 0.0
  %110 = vmatprep.subr.mxu0 0.0
  %111 = vmatpush1.msra.mxu0 0.0
  %112 = vmatprep.subr.mxu0 0.0
  %113 = vmatpush1.msra.mxu0 0.0
  %114 = vmatprep.subr.mxu0 0.0
  %115 = vmatpush1.msra.mxu0 0.0
  %116 = vmatprep.subr.mxu0 0.0
  %117 = vmatpush1.msra.mxu0 0.0
  %118 = vmatprep.subr.mxu0 0.0
  %119 = vmatpush1.msra.mxu0 0.0
  %120 = vmatprep.subr.mxu0 0.0
  %121 = vmatpush1.msra.mxu0 0.0
  %122 = vmatprep.subr.mxu0 0.0
  %123 = vmatpush1.msra.mxu0 0.0
  %124 = vmatprep.subr.mxu0 0.0
  %125 = vmatpush1.msra.mxu0 0.0
  %126 = vmatprep.subr.mxu0 0.0
  %127 = vmatpush1.msra.mxu0 0.0
  %128 = vmatprep.subr.mxu0 0.0
  %129 = vmatpush1.msra.mxu0 0.0
  %130 = vmatprep.subr.mxu0 0.0
  %131 = vmatpush1.msra.mxu0 0.0
  %132 = vmatprep.subr.mxu0 0.0
  %133 = vmatpush1.msra.mxu0 0.0
  %134 = vmatprep.subr.mxu0 0.0
  %135 = vmatpush1.msra.mxu0 0.0
  %136 = vmatprep.mubr.f32.mxu0 0.0
  %137 = vmatmul.mubr.f32.gmra.mrb[0].mxu0 %v49
  %v138 = vpop.f32.mrb[0].mxu0
  %v139 = vadd.f32 %v45, %v138
  %v140 = vpop.f32.mrb[0].mxu0
  %141 = vmatprep.mubr.f32.mxu0 0.0
  %142 = vmatmul.mubr.f32.gmra.mrb[0].mxu0 %v52
  %v143 = vpop.f32.mrb[0].mxu0
  %v144 = vadd.f32 %v45, %v143
  %v145 = vpop.f32.mrb[0].mxu0
  %146 = vmatprep.mubr.f32.mxu0 0.0
  %147 = vmatmul.mubr.f32.gmra.mrb[0].mxu0 %v55
  %v148 = vpop.f32.mrb[0].mxu0
  %v149 = vadd.f32 %v45, %v148
  %v150 = vpop.f32.mrb[0].mxu0
  %151 = vmatprep.mubr.f32.mxu0 0.0
  %152 = vmatmul.mubr.f32.gmra.mrb[0].mxu0 %v58
  %v153 = vpop.f32.mrb[0].mxu0
  %v154 = vadd.f32 %v45, %v153
  %v155 = vpop.f32.mrb[0].mxu0
  %156 = vmatprep.mubr.f32.mxu0 0.0
  %157 = vmatmul.mubr.f32.gmra.mrb[0].mxu0 %v61
  %v158 = vpop.f32.mrb[0].mxu0
  %v159 = vadd.f32 %v45, %v158
  %v160 = vpop.f32.mrb[0].mxu0
  %161 = vmatprep.mubr.f32.mxu0 0.0
  %162 = vmatmul.mubr.f32.gmra.mrb[0].mxu0 %v64
  %v163 = vpop.f32.mrb[0].mxu0
  %v164 = vadd.f32 %v45, %v163
  %v165 = vpop.f32.mrb[0].mxu0
  %166 = vmatprep.mubr.f32.mxu0 0.0
  %167 = vmatmul.mubr.f32.gmra.mrb[0].mxu0 %v67
  %v168 = vpop.f32.mrb[0].mxu0
  %v169 = vadd.f32 %v45, %v168
  %v170 = vpop.f32.mrb[0].mxu0
  %171 = vmatprep.mubr.f32.mxu0 0.0
  %172 = vmatmul.mubr.f32.gmra.mrb[0].mxu0 %v70
  %v173 = vpop.f32.mrb[0].mxu0
  %v174 = vadd.f32 %v45, %v173
  %v175 = vpop.f32.mrb[0].mxu0
  %176 = vdwg.mxu0
  %177 = vst [vmem:[#allocation2] sm:$0xff] %v139
  %178 = vst [vmem:[#allocation2 + $0x8] sm:$0xff] %v144
  %179 = vst [vmem:[#allocation2 + $0x10] sm:$0xff] %v149
  %180 = vst [vmem:[#allocation2 + $0x18] sm:$0xff] %v154
  %181 = vst [vmem:[#allocation2 + $0x20] sm:$0xff] %v159
  %182 = vst [vmem:[#allocation2 + $0x28] sm:$0xff] %v164
  %183 = vst [vmem:[#allocation2 + $0x30] sm:$0xff] %v169
  %184 = vst [vmem:[#allocation2 + $0x38] sm:$0xff] %v174
  %v185 = vld [vmem:[#allocation4] sm:$0xff]
  %v186 = vld [vmem:[#allocation5] sm:$0xff]
  %v187 = vld [vmem:[#allocation2] sm:$0xff]
  %v188 = vld [vmem:[%s3] sm:$0xff]
  %v189 = vld [vmem:[%s3 + $0x8] sm:$0xff]
  %v190 = vld [vmem:[%s3 + $0x10] sm:$0xff]
  %v191 = vld [vmem:[%s3 + $0x18] sm:$0xff]
  %vm192 = vcmask 261120
  %v194 = vsel %vm192, %v185, 0
  %196 = vmatprep.subr.mxu0 0.0
  %197 = vmatpush1.msra.mxu0 %v188
  %198 = vmatprep.subr.mxu0 0.0
  %199 = vmatpush1.msra.mxu0 %v189
  %200 = vmatprep.subr.mxu0 0.0
  %201 = vmatpush1.msra.mxu0 %v190
  %202 = vmatprep.subr.mxu0 0.0
  %203 = vmatpush1.msra.mxu0 %v191
  %204 = vmatprep.subr.mxu0 0.0
  %205 = vmatpush1.msra.mxu0 0.0
  %206 = vmatprep.subr.mxu0 0.0
  %207 = vmatpush1.msra.mxu0 0.0
  %208 = vmatprep.subr.mxu0 0.0
  %209 = vmatpush1.msra.mxu0 0.0
  %210 = vmatprep.subr.mxu0 0.0
  %211 = vmatpush1.msra.mxu0 0.0
  %212 = vmatprep.subr.mxu0 0.0
  %213 = vmatpush1.msra.mxu0 0.0
  %214 = vmatprep.subr.mxu0 0.0
  %215 = vmatpush1.msra.mxu0 0.0
  %216 = vmatprep.subr.mxu0 0.0
  %217 = vmatpush1.msra.mxu0 0.0
  %218 = vmatprep.subr.mxu0 0.0
  %219 = vmatpush1.msra.mxu0 0.0
  %220 = vmatprep.subr.mxu0 0.0
  %221 = vmatpush1.msra.mxu0 0.0
  %222 = vmatprep.subr.mxu0 0.0
  %223 = vmatpush1.msra.mxu0 0.0
  %224 = vmatprep.subr.mxu0 0.0
  %225 = vmatpush1.msra.mxu0 0.0
  %226 = vmatprep.subr.mxu0 0.0
  %227 = vmatpush1.msra.mxu0 0.0
  %228 = vmatprep.subr.mxu0 0.0
  %229 = vmatpush1.msra.mxu0 0.0
  %230 = vmatprep.subr.mxu0 0.0
  %231 = vmatpush1.msra.mxu0 0.0
  %232 = vmatprep.subr.mxu0 0.0
  %233 = vmatpush1.msra.mxu0 0.0
  %234 = vmatprep.subr.mxu0 0.0
  %235 = vmatpush1.msra.mxu0 0.0
  %236 = vmatprep.subr.mxu0 0.0
  %237 = vmatpush1.msra.mxu0 0.0
  %238 = vmatprep.subr.mxu0 0.0
  %239 = vmatpush1.msra.mxu0 0.0
  %240 = vmatprep.subr.mxu0 0.0
  %241 = vmatpush1.msra.mxu0 0.0
  %242 = vmatprep.subr.mxu0 0.0
  %243 = vmatpush1.msra.mxu0 0.0
  %244 = vmatprep.subr.mxu0 0.0
  %245 = vmatpush1.msra.mxu0 0.0
  %246 = vmatprep.subr.mxu0 0.0
  %247 = vmatpush1.msra.mxu0 0.0
  %248 = vmatprep.subr.mxu0 0.0
  %249 = vmatpush1.msra.mxu0 0.0
  %250 = vmatprep.subr.mxu0 0.0
  %251 = vmatpush1.msra.mxu0 0.0
  %252 = vmatprep.subr.mxu0 0.0
  %253 = vmatpush1.msra.mxu0 0.0
  %254 = vmatprep.subr.mxu0 0.0
  %255 = vmatpush1.msra.mxu0 0.0
  %256 = vmatprep.subr.mxu0 0.0
  %257 = vmatpush1.msra.mxu0 0.0
  %258 = vmatprep.subr.mxu0 0.0
  %259 = vmatpush1.msra.mxu0 0.0
  %260 = vmatprep.mubr.f32.mxu0 0.0
  %261 = vmatmul.mubr.f32.gmra.mrb[0].mxu0 %v194
  %v262 = vpop.f32.mrb[0].mxu0
  %v263 = vadd.f32 0.0, %v262
  %v264 = vpop.f32.mrb[0].mxu0
  %265 = vdwg.mxu0
  %v266 = vadd.f32 %v187, %v263
  %v267 = vxor.u32 %v266, 2147483648
  %v268 = vmul.f32 %v267, 1.442695
  %v269 = vpow.pop %v268
  %v270 = vadd.f32 %v269, 1.0
  %v271 = vrcp.pop %v270
  %v272 = vmul.f32 1.0, %v271
  %v273 = vtanh.pop %v266
  %275 = vrot.lane.b32.xlu0 %v186, 32
  %v276 = vpop.permute.xlu0 %275
  %v278 = vmul.f32 %v272, %v276
  %280 = vrot.lane.b32.xlu0 %v273, 64
  %v281 = vpop.permute.xlu0 %280
  %v283 = vmul.f32 %v272, %v281
  %285 = vrot.lane.b32.xlu0 %v283, 32
  %v286 = vpop.permute.xlu0 %285
  %v288 = vadd.f32 %v278, %v286
  %v289 = vtanh.pop %v288
  %291 = vrot.lane.b32.xlu0 %v289, 64
  %v292 = vpop.permute.xlu0 %291
  %v294 = vmul.f32 %v272, %v292
  %296 = vrot.lane.b32.xlu0 %v294, 32
  %v297 = vpop.permute.xlu0 %296
  %299 = vst.msk [vmem:[#allocation3] sm:$0xff] %vm192, %v297
  %s300 = scalar_lea.vmem [#allocation2], 8
  %v301 = vld [vmem:[%s300] sm:$0xff]
  %v302 = vld [vmem:[%s3] sm:$0xff]
  %v303 = vld [vmem:[%s3 + $0x8] sm:$0xff]
  %v304 = vld [vmem:[%s3 + $0x10] sm:$0xff]
  %v305 = vld [vmem:[%s3 + $0x18] sm:$0xff]
  %v306 = vsel %vm192, %v297, 0
  %308 = vmatprep.subr.mxu0 0.0
  %309 = vmatpush1.msra.mxu0 %v302
  %310 = vmatprep.subr.mxu0 0.0
  %311 = vmatpush1.msra.mxu0 %v303
  %312 = vmatprep.subr.mxu0 0.0
  %313 = vmatpush1.msra.mxu0 %v304
  %314 = vmatprep.subr.mxu0 0.0
  %315 = vmatpush1.msra.mxu0 %v305
  %316 = vmatprep.subr.mxu0 0.0
  %317 = vmatpush1.msra.mxu0 0.0
  %318 = vmatprep.subr.mxu0 0.0
  %319 = vmatpush1.msra.mxu0 0.0
  %320 = vmatprep.subr.mxu0 0.0
  %321 = vmatpush1.msra.mxu0 0.0
  %322 = vmatprep.subr.mxu0 0.0
  %323 = vmatpush1.msra.mxu0 0.0
  %324 = vmatprep.subr.mxu0 0.0
  %325 = vmatpush1.msra.mxu0 0.0
  %326 = vmatprep.subr.mxu0 0.0
  %327 = vmatpush1.msra.mxu0 0.0
  %328 = vmatprep.subr.mxu0 0.0
  %329 = vmatpush1.msra.mxu0 0.0
  %330 = vmatprep.subr.mxu0 0.0
  %331 = vmatpush1.msra.mxu0 0.0
  %332 = vmatprep.subr.mxu0 0.0
  %333 = vmatpush1.msra.mxu0 0.0
  %334 = vmatprep.subr.mxu0 0.0
  %335 = vmatpush1.msra.mxu0 0.0
  %336 = vmatprep.subr.mxu0 0.0
  %337 = vmatpush1.msra.mxu0 0.0
  %338 = vmatprep.subr.mxu0 0.0
  %339 = vmatpush1.msra.mxu0 0.0
  %340 = vmatprep.subr.mxu0 0.0
  %341 = vmatpush1.msra.mxu0 0.0
  %342 = vmatprep.subr.mxu0 0.0
  %343 = vmatpush1.msra.mxu0 0.0
  %344 = vmatprep.subr.mxu0 0.0
  %345 = vmatpush1.msra.mxu0 0.0
  %346 = vmatprep.subr.mxu0 0.0
  %347 = vmatpush1.msra.mxu0 0.0
  %348 = vmatprep.subr.mxu0 0.0
  %349 = vmatpush1.msra.mxu0 0.0
  %350 = vmatprep.subr.mxu0 0.0
  %351 = vmatpush1.msra.mxu0 0.0
  %352 = vmatprep.subr.mxu0 0.0
  %353 = vmatpush1.msra.mxu0 0.0
  %354 = vmatprep.subr.mxu0 0.0
  %355 = vmatpush1.msra.mxu0 0.0
  %356 = vmatprep.subr.mxu0 0.0
  %357 = vmatpush1.msra.mxu0 0.0
  %358 = vmatprep.subr.mxu0 0.0
  %359 = vmatpush1.msra.mxu0 0.0
  %360 = vmatprep.subr.mxu0 0.0
  %361 = vmatpush1.msra.mxu0 0.0
  %362 = vmatprep.subr.mxu0 0.0
  %363 = vmatpush1.msra.mxu0 0.0
  %364 = vmatprep.subr.mxu0 0.0
  %365 = vmatpush1.msra.mxu0 0.0
  %366 = vmatprep.subr.mxu0 0.0
  %367 = vmatpush1.msra.mxu0 0.0
  %368 = vmatprep.subr.mxu0 0.0
  %369 = vmatpush1.msra.mxu0 0.0
  %370 = vmatprep.subr.mxu0 0.0
  %371 = vmatpush1.msra.mxu0 0.0
  %372 = vmatprep.mubr.f32.mxu0 0.0
  %373 = vmatmul.mubr.f32.gmra.mrb[0].mxu0 %v306
  %v374 = vpop.f32.mrb[0].mxu0
  %v375 = vadd.f32 0.0, %v374
  %v376 = vpop.f32.mrb[0].mxu0
  %377 = vdwg.mxu0
  %v378 = vadd.f32 %v301, %v375
  %v379 = vxor.u32 %v378, 2147483648
  %v380 = vmul.f32 %v379, 1.442695
  %v381 = vpow.pop %v380
  %v382 = vadd.f32 %v381, 1.0
  %v383 = vrcp.pop %v382
  %v384 = vmul.f32 1.0, %v383
  %v385 = vtanh.pop %v378
  %v386 = vmul.f32 %v384, %v288
  %388 = vrot.lane.b32.xlu0 %v385, 64
  %v389 = vpop.permute.xlu0 %388
  %v391 = vmul.f32 %v384, %v389
  %393 = vrot.lane.b32.xlu0 %v391, 32
  %v394 = vpop.permute.xlu0 %393
  %v396 = vadd.f32 %v386, %v394
  %v397 = vtanh.pop %v396
  %399 = vrot.lane.b32.xlu0 %v397, 64
  %v400 = vpop.permute.xlu0 %399
  %v402 = vmul.f32 %v384, %v400
  %404 = vrot.lane.b32.xlu0 %v402, 32
  %v405 = vpop.permute.xlu0 %404
  %s407 = scalar_lea.vmem [#allocation3], 8
  %408 = vst.msk [vmem:[%s407] sm:$0xff] %vm192, %v405
  %s409 = scalar_lea.vmem [#allocation2], 16
  %v410 = vld [vmem:[%s409] sm:$0xff]
  %v411 = vld [vmem:[%s3] sm:$0xff]
  %v412 = vld [vmem:[%s3 + $0x8] sm:$0xff]
  %v413 = vld [vmem:[%s3 + $0x10] sm:$0xff]
  %v414 = vld [vmem:[%s3 + $0x18] sm:$0xff]
  %v415 = vsel %vm192, %v405, 0
  %417 = vmatprep.subr.mxu0 0.0
  %418 = vmatpush1.msra.mxu0 %v411
  %419 = vmatprep.subr.mxu0 0.0
  %420 = vmatpush1.msra.mxu0 %v412
  %421 = vmatprep.subr.mxu0 0.0
  %422 = vmatpush1.msra.mxu0 %v413
  %423 = vmatprep.subr.mxu0 0.0
  %424 = vmatpush1.msra.mxu0 %v414
  %425 = vmatprep.subr.mxu0 0.0
  %426 = vmatpush1.msra.mxu0 0.0
  %427 = vmatprep.subr.mxu0 0.0
  %428 = vmatpush1.msra.mxu0 0.0
  %429 = vmatprep.subr.mxu0 0.0
  %430 = vmatpush1.msra.mxu0 0.0
  %431 = vmatprep.subr.mxu0 0.0
  %432 = vmatpush1.msra.mxu0 0.0
  %433 = vmatprep.subr.mxu0 0.0
  %434 = vmatpush1.msra.mxu0 0.0
  %435 = vmatprep.subr.mxu0 0.0
  %436 = vmatpush1.msra.mxu0 0.0
  %437 = vmatprep.subr.mxu0 0.0
  %438 = vmatpush1.msra.mxu0 0.0
  %439 = vmatprep.subr.mxu0 0.0
  %440 = vmatpush1.msra.mxu0 0.0
  %441 = vmatprep.subr.mxu0 0.0
  %442 = vmatpush1.msra.mxu0 0.0
  %443 = vmatprep.subr.mxu0 0.0
  %444 = vmatpush1.msra.mxu0 0.0
  %445 = vmatprep.subr.mxu0 0.0
  %446 = vmatpush1.msra.mxu0 0.0
  %447 = vmatprep.subr.mxu0 0.0
  %448 = vmatpush1.msra.mxu0 0.0
  %449 = vmatprep.subr.mxu0 0.0
  %450 = vmatpush1.msra.mxu0 0.0
  %451 = vmatprep.subr.mxu0 0.0
  %452 = vmatpush1.msra.mxu0 0.0
  %453 = vmatprep.subr.mxu0 0.0
  %454 = vmatpush1.msra.mxu0 0.0
  %455 = vmatprep.subr.mxu0 0.0
  %456 = vmatpush1.msra.mxu0 0.0
  %457 = vmatprep.subr.mxu0 0.0
  %458 = vmatpush1.msra.mxu0 0.0
  %459 = vmatprep.subr.mxu0 0.0
  %460 = vmatpush1.msra.mxu0 0.0
  %461 = vmatprep.subr.mxu0 0.0
  %462 = vmatpush1.msra.mxu0 0.0
  %463 = vmatprep.subr.mxu0 0.0
  %464 = vmatpush1.msra.mxu0 0.0
  %465 = vmatprep.subr.mxu0 0.0
  %466 = vmatpush1.msra.mxu0 0.0
  %467 = vmatprep.subr.mxu0 0.0
  %468 = vmatpush1.msra.mxu0 0.0
  %469 = vmatprep.subr.mxu0 0.0
  %470 = vmatpush1.msra.mxu0 0.0
  %471 = vmatprep.subr.mxu0 0.0
  %472 = vmatpush1.msra.mxu0 0.0
  %473 = vmatprep.subr.mxu0 0.0
  %474 = vmatpush1.msra.mxu0 0.0
  %475 = vmatprep.subr.mxu0 0.0
  %476 = vmatpush1.msra.mxu0 0.0
  %477 = vmatprep.subr.mxu0 0.0
  %478 = vmatpush1.msra.mxu0 0.0
  %479 = vmatprep.subr.mxu0 0.0
  %480 = vmatpush1.msra.mxu0 0.0
  %481 = vmatprep.mubr.f32.mxu0 0.0
  %482 = vmatmul.mubr.f32.gmra.mrb[0].mxu0 %v415
  %v483 = vpop.f32.mrb[0].mxu0
  %v484 = vadd.f32 0.0, %v483
  %v485 = vpop.f32.mrb[0].mxu0
  %486 = vdwg.mxu0
  %v487 = vadd.f32 %v410, %v484
  %v488 = vxor.u32 %v487, 2147483648
  %v489 = vmul.f32 %v488, 1.442695
  %v490 = vpow.pop %v489
  %v491 = vadd.f32 %v490, 1.0
  %v492 = vrcp.pop %v491
  %v493 = vmul.f32 1.0, %v492
  %v494 = vtanh.pop %v487
  %v495 = vmul.f32 %v493, %v396
  %497 = vrot.lane.b32.xlu0 %v494, 64
  %v498 = vpop.permute.xlu0 %497
  %v500 = vmul.f32 %v493, %v498
  %502 = vrot.lane.b32.xlu0 %v500, 32
  %v503 = vpop.permute.xlu0 %502
  %v505 = vadd.f32 %v495, %v503
  %v506 = vtanh.pop %v505
  %508 = vrot.lane.b32.xlu0 %v506, 64
  %v509 = vpop.permute.xlu0 %508
  %v511 = vmul.f32 %v493, %v509
  %513 = vrot.lane.b32.xlu0 %v511, 32
  %v514 = vpop.permute.xlu0 %513
  %s516 = scalar_lea.vmem [#allocation3], 16
  %517 = vst.msk [vmem:[%s516] sm:$0xff] %vm192, %v514
  %s518 = scalar_lea.vmem [#allocation2], 24
  %v519 = vld [vmem:[%s518] sm:$0xff]
  %v520 = vld [vmem:[%s3] sm:$0xff]
  %v521 = vld [vmem:[%s3 + $0x8] sm:$0xff]
  %v522 = vld [vmem:[%s3 + $0x10] sm:$0xff]
  %v523 = vld [vmem:[%s3 + $0x18] sm:$0xff]
  %v524 = vsel %vm192, %v514, 0
  %526 = vmatprep.subr.mxu0 0.0
  %527 = vmatpush1.msra.mxu0 %v520
  %528 = vmatprep.subr.mxu0 0.0
  %529 = vmatpush1.msra.mxu0 %v521
  %530 = vmatprep.subr.mxu0 0.0
  %531 = vmatpush1.msra.mxu0 %v522
  %532 = vmatprep.subr.mxu0 0.0
  %533 = vmatpush1.msra.mxu0 %v523
  %534 = vmatprep.subr.mxu0 0.0
  %535 = vmatpush1.msra.mxu0 0.0
  %536 = vmatprep.subr.mxu0 0.0
  %537 = vmatpush1.msra.mxu0 0.0
  %538 = vmatprep.subr.mxu0 0.0
  %539 = vmatpush1.msra.mxu0 0.0
  %540 = vmatprep.subr.mxu0 0.0
  %541 = vmatpush1.msra.mxu0 0.0
  %542 = vmatprep.subr.mxu0 0.0
  %543 = vmatpush1.msra.mxu0 0.0
  %544 = vmatprep.subr.mxu0 0.0
  %545 = vmatpush1.msra.mxu0 0.0
  %546 = vmatprep.subr.mxu0 0.0
  %547 = vmatpush1.msra.mxu0 0.0
  %548 = vmatprep.subr.mxu0 0.0
  %549 = vmatpush1.msra.mxu0 0.0
  %550 = vmatprep.subr.mxu0 0.0
  %551 = vmatpush1.msra.mxu0 0.0
  %552 = vmatprep.subr.mxu0 0.0
  %553 = vmatpush1.msra.mxu0 0.0
  %554 = vmatprep.subr.mxu0 0.0
  %555 = vmatpush1.msra.mxu0 0.0
  %556 = vmatprep.subr.mxu0 0.0
  %557 = vmatpush1.msra.mxu0 0.0
  %558 = vmatprep.subr.mxu0 0.0
  %559 = vmatpush1.msra.mxu0 0.0
  %560 = vmatprep.subr.mxu0 0.0
  %561 = vmatpush1.msra.mxu0 0.0
  %562 = vmatprep.subr.mxu0 0.0
  %563 = vmatpush1.msra.mxu0 0.0
  %564 = vmatprep.subr.mxu0 0.0
  %565 = vmatpush1.msra.mxu0 0.0
  %566 = vmatprep.subr.mxu0 0.0
  %567 = vmatpush1.msra.mxu0 0.0
  %568 = vmatprep.subr.mxu0 0.0
  %569 = vmatpush1.msra.mxu0 0.0
  %570 = vmatprep.subr.mxu0 0.0
  %571 = vmatpush1.msra.mxu0 0.0
  %572 = vmatprep.subr.mxu0 0.0
  %573 = vmatpush1.msra.mxu0 0.0
  %574 = vmatprep.subr.mxu0 0.0
  %575 = vmatpush1.msra.mxu0 0.0
  %576 = vmatprep.subr.mxu0 0.0
  %577 = vmatpush1.msra.mxu0 0.0
  %578 = vmatprep.subr.mxu0 0.0
  %579 = vmatpush1.msra.mxu0 0.0
  %580 = vmatprep.subr.mxu0 0.0
  %581 = vmatpush1.msra.mxu0 0.0
  %582 = vmatprep.subr.mxu0 0.0
  %583 = vmatpush1.msra.mxu0 0.0
  %584 = vmatprep.subr.mxu0 0.0
  %585 = vmatpush1.msra.mxu0 0.0
  %586 = vmatprep.subr.mxu0 0.0
  %587 = vmatpush1.msra.mxu0 0.0
  %588 = vmatprep.subr.mxu0 0.0
  %589 = vmatpush1.msra.mxu0 0.0
  %590 = vmatprep.mubr.f32.mxu0 0.0
  %591 = vmatmul.mubr.f32.gmra.mrb[0].mxu0 %v524
  %v592 = vpop.f32.mrb[0].mxu0
  %v593 = vadd.f32 0.0, %v592
  %v594 = vpop.f32.mrb[0].mxu0
  %595 = vdwg.mxu0
  %v596 = vadd.f32 %v519, %v593
  %v597 = vxor.u32 %v596, 2147483648
  %v598 = vmul.f32 %v597, 1.442695
  %v599 = vpow.pop %v598
  %v600 = vadd.f32 %v599, 1.0
  %v601 = vrcp.pop %v600
  %v602 = vmul.f32 1.0, %v601
  %v603 = vtanh.pop %v596
  %v604 = vmul.f32 %v602, %v505
  %606 = vrot.lane.b32.xlu0 %v603, 64
  %v607 = vpop.permute.xlu0 %606
  %v609 = vmul.f32 %v602, %v607
  %611 = vrot.lane.b32.xlu0 %v609, 32
  %v612 = vpop.permute.xlu0 %611
  %v614 = vadd.f32 %v604, %v612
  %v615 = vtanh.pop %v614
  %617 = vrot.lane.b32.xlu0 %v615, 64
  %v618 = vpop.permute.xlu0 %617
  %v620 = vmul.f32 %v602, %v618
  %622 = vrot.lane.b32.xlu0 %v620, 32
  %v623 = vpop.permute.xlu0 %622
  %s625 = scalar_lea.vmem [#allocation3], 24
  %626 = vst.msk [vmem:[%s625] sm:$0xff] %vm192, %v623
  %s627 = scalar_lea.vmem [#allocation2], 32
  %v628 = vld [vmem:[%s627] sm:$0xff]
  %v629 = vld [vmem:[%s3] sm:$0xff]
  %v630 = vld [vmem:[%s3 + $0x8] sm:$0xff]
  %v631 = vld [vmem:[%s3 + $0x10] sm:$0xff]
  %v632 = vld [vmem:[%s3 + $0x18] sm:$0xff]
  %v633 = vsel %vm192, %v623, 0
  %635 = vmatprep.subr.mxu0 0.0
  %636 = vmatpush1.msra.mxu0 %v629
  %637 = vmatprep.subr.mxu0 0.0
  %638 = vmatpush1.msra.mxu0 %v630
  %639 = vmatprep.subr.mxu0 0.0
  %640 = vmatpush1.msra.mxu0 %v631
  %641 = vmatprep.subr.mxu0 0.0
  %642 = vmatpush1.msra.mxu0 %v632
  %643 = vmatprep.subr.mxu0 0.0
  %644 = vmatpush1.msra.mxu0 0.0
  %645 = vmatprep.subr.mxu0 0.0
  %646 = vmatpush1.msra.mxu0 0.0
  %647 = vmatprep.subr.mxu0 0.0
  %648 = vmatpush1.msra.mxu0 0.0
  %649 = vmatprep.subr.mxu0 0.0
  %650 = vmatpush1.msra.mxu0 0.0
  %651 = vmatprep.subr.mxu0 0.0
  %652 = vmatpush1.msra.mxu0 0.0
  %653 = vmatprep.subr.mxu0 0.0
  %654 = vmatpush1.msra.mxu0 0.0
  %655 = vmatprep.subr.mxu0 0.0
  %656 = vmatpush1.msra.mxu0 0.0
  %657 = vmatprep.subr.mxu0 0.0
  %658 = vmatpush1.msra.mxu0 0.0
  %659 = vmatprep.subr.mxu0 0.0
  %660 = vmatpush1.msra.mxu0 0.0
  %661 = vmatprep.subr.mxu0 0.0
  %662 = vmatpush1.msra.mxu0 0.0
  %663 = vmatprep.subr.mxu0 0.0
  %664 = vmatpush1.msra.mxu0 0.0
  %665 = vmatprep.subr.mxu0 0.0
  %666 = vmatpush1.msra.mxu0 0.0
  %667 = vmatprep.subr.mxu0 0.0
  %668 = vmatpush1.msra.mxu0 0.0
  %669 = vmatprep.subr.mxu0 0.0
  %670 = vmatpush1.msra.mxu0 0.0
  %671 = vmatprep.subr.mxu0 0.0
  %672 = vmatpush1.msra.mxu0 0.0
  %673 = vmatprep.subr.mxu0 0.0
  %674 = vmatpush1.msra.mxu0 0.0
  %675 = vmatprep.subr.mxu0 0.0
  %676 = vmatpush1.msra.mxu0 0.0
  %677 = vmatprep.subr.mxu0 0.0
  %678 = vmatpush1.msra.mxu0 0.0
  %679 = vmatprep.subr.mxu0 0.0
  %680 = vmatpush1.msra.mxu0 0.0
  %681 = vmatprep.subr.mxu0 0.0
  %682 = vmatpush1.msra.mxu0 0.0
  %683 = vmatprep.subr.mxu0 0.0
  %684 = vmatpush1.msra.mxu0 0.0
  %685 = vmatprep.subr.mxu0 0.0
  %686 = vmatpush1.msra.mxu0 0.0
  %687 = vmatprep.subr.mxu0 0.0
  %688 = vmatpush1.msra.mxu0 0.0
  %689 = vmatprep.subr.mxu0 0.0
  %690 = vmatpush1.msra.mxu0 0.0
  %691 = vmatprep.subr.mxu0 0.0
  %692 = vmatpush1.msra.mxu0 0.0
  %693 = vmatprep.subr.mxu0 0.0
  %694 = vmatpush1.msra.mxu0 0.0
  %695 = vmatprep.subr.mxu0 0.0
  %696 = vmatpush1.msra.mxu0 0.0
  %697 = vmatprep.subr.mxu0 0.0
  %698 = vmatpush1.msra.mxu0 0.0
  %699 = vmatprep.mubr.f32.mxu0 0.0
  %700 = vmatmul.mubr.f32.gmra.mrb[0].mxu0 %v633
  %v701 = vpop.f32.mrb[0].mxu0
  %v702 = vadd.f32 0.0, %v701
  %v703 = vpop.f32.mrb[0].mxu0
  %704 = vdwg.mxu0
  %v705 = vadd.f32 %v628, %v702
  %v706 = vxor.u32 %v705, 2147483648
  %v707 = vmul.f32 %v706, 1.442695
  %v708 = vpow.pop %v707
  %v709 = vadd.f32 %v708, 1.0
  %v710 = vrcp.pop %v709
  %v711 = vmul.f32 1.0, %v710
  %v712 = vtanh.pop %v705
  %v713 = vmul.f32 %v711, %v614
  %715 = vrot.lane.b32.xlu0 %v712, 64
  %v716 = vpop.permute.xlu0 %715
  %v718 = vmul.f32 %v711, %v716
  %720 = vrot.lane.b32.xlu0 %v718, 32
  %v721 = vpop.permute.xlu0 %720
  %v723 = vadd.f32 %v713, %v721
  %v724 = vtanh.pop %v723
  %726 = vrot.lane.b32.xlu0 %v724, 64
  %v727 = vpop.permute.xlu0 %726
  %v729 = vmul.f32 %v711, %v727
  %731 = vrot.lane.b32.xlu0 %v729, 32
  %v732 = vpop.permute.xlu0 %731
  %s734 = scalar_lea.vmem [#allocation3], 32
  %735 = vst.msk [vmem:[%s734] sm:$0xff] %vm192, %v732
  %s736 = scalar_lea.vmem [#allocation2], 40
  %v737 = vld [vmem:[%s736] sm:$0xff]
  %v738 = vld [vmem:[%s3] sm:$0xff]
  %v739 = vld [vmem:[%s3 + $0x8] sm:$0xff]
  %v740 = vld [vmem:[%s3 + $0x10] sm:$0xff]
  %v741 = vld [vmem:[%s3 + $0x18] sm:$0xff]
  %v742 = vsel %vm192, %v732, 0
  %744 = vmatprep.subr.mxu0 0.0
  %745 = vmatpush1.msra.mxu0 %v738
  %746 = vmatprep.subr.mxu0 0.0
  %747 = vmatpush1.msra.mxu0 %v739
  %748 = vmatprep.subr.mxu0 0.0
  %749 = vmatpush1.msra.mxu0 %v740
  %750 = vmatprep.subr.mxu0 0.0
  %751 = vmatpush1.msra.mxu0 %v741
  %752 = vmatprep.subr.mxu0 0.0
  %753 = vmatpush1.msra.mxu0 0.0
  %754 = vmatprep.subr.mxu0 0.0
  %755 = vmatpush1.msra.mxu0 0.0
  %756 = vmatprep.subr.mxu0 0.0
  %757 = vmatpush1.msra.mxu0 0.0
  %758 = vmatprep.subr.mxu0 0.0
  %759 = vmatpush1.msra.mxu0 0.0
  %760 = vmatprep.subr.mxu0 0.0
  %761 = vmatpush1.msra.mxu0 0.0
  %762 = vmatprep.subr.mxu0 0.0
  %763 = vmatpush1.msra.mxu0 0.0
  %764 = vmatprep.subr.mxu0 0.0
  %765 = vmatpush1.msra.mxu0 0.0
  %766 = vmatprep.subr.mxu0 0.0
  %767 = vmatpush1.msra.mxu0 0.0
  %768 = vmatprep.subr.mxu0 0.0
  %769 = vmatpush1.msra.mxu0 0.0
  %770 = vmatprep.subr.mxu0 0.0
  %771 = vmatpush1.msra.mxu0 0.0
  %772 = vmatprep.subr.mxu0 0.0
  %773 = vmatpush1.msra.mxu0 0.0
  %774 = vmatprep.subr.mxu0 0.0
  %775 = vmatpush1.msra.mxu0 0.0
  %776 = vmatprep.subr.mxu0 0.0
  %777 = vmatpush1.msra.mxu0 0.0
  %778 = vmatprep.subr.mxu0 0.0
  %779 = vmatpush1.msra.mxu0 0.0
  %780 = vmatprep.subr.mxu0 0.0
  %781 = vmatpush1.msra.mxu0 0.0
  %782 = vmatprep.subr.mxu0 0.0
  %783 = vmatpush1.msra.mxu0 0.0
  %784 = vmatprep.subr.mxu0 0.0
  %785 = vmatpush1.msra.mxu0 0.0
  %786 = vmatprep.subr.mxu0 0.0
  %787 = vmatpush1.msra.mxu0 0.0
  %788 = vmatprep.subr.mxu0 0.0
  %789 = vmatpush1.msra.mxu0 0.0
  %790 = vmatprep.subr.mxu0 0.0
  %791 = vmatpush1.msra.mxu0 0.0
  %792 = vmatprep.subr.mxu0 0.0
  %793 = vmatpush1.msra.mxu0 0.0
  %794 = vmatprep.subr.mxu0 0.0
  %795 = vmatpush1.msra.mxu0 0.0
  %796 = vmatprep.subr.mxu0 0.0
  %797 = vmatpush1.msra.mxu0 0.0
  %798 = vmatprep.subr.mxu0 0.0
  %799 = vmatpush1.msra.mxu0 0.0
  %800 = vmatprep.subr.mxu0 0.0
  %801 = vmatpush1.msra.mxu0 0.0
  %802 = vmatprep.subr.mxu0 0.0
  %803 = vmatpush1.msra.mxu0 0.0
  %804 = vmatprep.subr.mxu0 0.0
  %805 = vmatpush1.msra.mxu0 0.0
  %806 = vmatprep.subr.mxu0 0.0
  %807 = vmatpush1.msra.mxu0 0.0
  %808 = vmatprep.mubr.f32.mxu0 0.0
  %809 = vmatmul.mubr.f32.gmra.mrb[0].mxu0 %v742
  %v810 = vpop.f32.mrb[0].mxu0
  %v811 = vadd.f32 0.0, %v810
  %v812 = vpop.f32.mrb[0].mxu0
  %813 = vdwg.mxu0
  %v814 = vadd.f32 %v737, %v811
  %v815 = vxor.u32 %v814, 2147483648
  %v816 = vmul.f32 %v815, 1.442695
  %v817 = vpow.pop %v816
  %v818 = vadd.f32 %v817, 1.0
  %v819 = vrcp.pop %v818
  %v820 = vmul.f32 1.0, %v819
  %v821 = vtanh.pop %v814
  %v822 = vmul.f32 %v820, %v723
  %824 = vrot.lane.b32.xlu0 %v821, 64
  %v825 = vpop.permute.xlu0 %824
  %v827 = vmul.f32 %v820, %v825
  %829 = vrot.lane.b32.xlu0 %v827, 32
  %v830 = vpop.permute.xlu0 %829
  %v832 = vadd.f32 %v822, %v830
  %v833 = vtanh.pop %v832
  %835 = vrot.lane.b32.xlu0 %v833, 64
  %v836 = vpop.permute.xlu0 %835
  %v838 = vmul.f32 %v820, %v836
  %840 = vrot.lane.b32.xlu0 %v838, 32
  %v841 = vpop.permute.xlu0 %840
  %s843 = scalar_lea.vmem [#allocation3], 40
  %844 = vst.msk [vmem:[%s843] sm:$0xff] %vm192, %v841
  %s845 = scalar_lea.vmem [#allocation2], 48
  %v846 = vld [vmem:[%s845] sm:$0xff]
  %v847 = vld [vmem:[%s3] sm:$0xff]
  %v848 = vld [vmem:[%s3 + $0x8] sm:$0xff]
  %v849 = vld [vmem:[%s3 + $0x10] sm:$0xff]
  %v850 = vld [vmem:[%s3 + $0x18] sm:$0xff]
  %v851 = vsel %vm192, %v841, 0
  %853 = vmatprep.subr.mxu0 0.0
  %854 = vmatpush1.msra.mxu0 %v847
  %855 = vmatprep.subr.mxu0 0.0
  %856 = vmatpush1.msra.mxu0 %v848
  %857 = vmatprep.subr.mxu0 0.0
  %858 = vmatpush1.msra.mxu0 %v849
  %859 = vmatprep.subr.mxu0 0.0
  %860 = vmatpush1.msra.mxu0 %v850
  %861 = vmatprep.subr.mxu0 0.0
  %862 = vmatpush1.msra.mxu0 0.0
  %863 = vmatprep.subr.mxu0 0.0
  %864 = vmatpush1.msra.mxu0 0.0
  %865 = vmatprep.subr.mxu0 0.0
  %866 = vmatpush1.msra.mxu0 0.0
  %867 = vmatprep.subr.mxu0 0.0
  %868 = vmatpush1.msra.mxu0 0.0
  %869 = vmatprep.subr.mxu0 0.0
  %870 = vmatpush1.msra.mxu0 0.0
  %871 = vmatprep.subr.mxu0 0.0
  %872 = vmatpush1.msra.mxu0 0.0
  %873 = vmatprep.subr.mxu0 0.0
  %874 = vmatpush1.msra.mxu0 0.0
  %875 = vmatprep.subr.mxu0 0.0
  %876 = vmatpush1.msra.mxu0 0.0
  %877 = vmatprep.subr.mxu0 0.0
  %878 = vmatpush1.msra.mxu0 0.0
  %879 = vmatprep.subr.mxu0 0.0
  %880 = vmatpush1.msra.mxu0 0.0
  %881 = vmatprep.subr.mxu0 0.0
  %882 = vmatpush1.msra.mxu0 0.0
  %883 = vmatprep.subr.mxu0 0.0
  %884 = vmatpush1.msra.mxu0 0.0
  %885 = vmatprep.subr.mxu0 0.0
  %886 = vmatpush1.msra.mxu0 0.0
  %887 = vmatprep.subr.mxu0 0.0
  %888 = vmatpush1.msra.mxu0 0.0
  %889 = vmatprep.subr.mxu0 0.0
  %890 = vmatpush1.msra.mxu0 0.0
  %891 = vmatprep.subr.mxu0 0.0
  %892 = vmatpush1.msra.mxu0 0.0
  %893 = vmatprep.subr.mxu0 0.0
  %894 = vmatpush1.msra.mxu0 0.0
  %895 = vmatprep.subr.mxu0 0.0
  %896 = vmatpush1.msra.mxu0 0.0
  %897 = vmatprep.subr.mxu0 0.0
  %898 = vmatpush1.msra.mxu0 0.0
  %899 = vmatprep.subr.mxu0 0.0
  %900 = vmatpush1.msra.mxu0 0.0
  %901 = vmatprep.subr.mxu0 0.0
  %902 = vmatpush1.msra.mxu0 0.0
  %903 = vmatprep.subr.mxu0 0.0
  %904 = vmatpush1.msra.mxu0 0.0
  %905 = vmatprep.subr.mxu0 0.0
  %906 = vmatpush1.msra.mxu0 0.0
  %907 = vmatprep.subr.mxu0 0.0
  %908 = vmatpush1.msra.mxu0 0.0
  %909 = vmatprep.subr.mxu0 0.0
  %910 = vmatpush1.msra.mxu0 0.0
  %911 = vmatprep.subr.mxu0 0.0
  %912 = vmatpush1.msra.mxu0 0.0
  %913 = vmatprep.subr.mxu0 0.0
  %914 = vmatpush1.msra.mxu0 0.0
  %915 = vmatprep.subr.mxu0 0.0
  %916 = vmatpush1.msra.mxu0 0.0
  %917 = vmatprep.mubr.f32.mxu0 0.0
  %918 = vmatmul.mubr.f32.gmra.mrb[0].mxu0 %v851
  %v919 = vpop.f32.mrb[0].mxu0
  %v920 = vadd.f32 0.0, %v919
  %v921 = vpop.f32.mrb[0].mxu0
  %922 = vdwg.mxu0
  %v923 = vadd.f32 %v846, %v920
  %v924 = vxor.u32 %v923, 2147483648
  %v925 = vmul.f32 %v924, 1.442695
  %v926 = vpow.pop %v925
  %v927 = vadd.f32 %v926, 1.0
  %v928 = vrcp.pop %v927
  %v929 = vmul.f32 1.0, %v928
  %v930 = vtanh.pop %v923
  %v931 = vmul.f32 %v929, %v832
  %933 = vrot.lane.b32.xlu0 %v930, 64
  %v934 = vpop.permute.xlu0 %933
  %v936 = vmul.f32 %v929, %v934
  %938 = vrot.lane.b32.xlu0 %v936, 32
  %v939 = vpop.permute.xlu0 %938
  %v941 = vadd.f32 %v931, %v939
  %v942 = vtanh.pop %v941
  %944 = vrot.lane.b32.xlu0 %v942, 64
  %v945 = vpop.permute.xlu0 %944
  %v947 = vmul.f32 %v929, %v945
  %949 = vrot.lane.b32.xlu0 %v947, 32
  %v950 = vpop.permute.xlu0 %949
  %s952 = scalar_lea.vmem [#allocation3], 48
  %953 = vst.msk [vmem:[%s952] sm:$0xff] %vm192, %v950
  %s954 = scalar_lea.vmem [#allocation2], 56
  %v955 = vld [vmem:[%s954] sm:$0xff]
  %v956 = vld [vmem:[%s3] sm:$0xff]
  %v957 = vld [vmem:[%s3 + $0x8] sm:$0xff]
  %v958 = vld [vmem:[%s3 + $0x10] sm:$0xff]
  %v959 = vld [vmem:[%s3 + $0x18] sm:$0xff]
  %v960 = vsel %vm192, %v950, 0
  %962 = vmatprep.subr.mxu0 0.0
  %963 = vmatpush1.msra.mxu0 %v956
  %964 = vmatprep.subr.mxu0 0.0
  %965 = vmatpush1.msra.mxu0 %v957
  %966 = vmatprep.subr.mxu0 0.0
  %967 = vmatpush1.msra.mxu0 %v958
  %968 = vmatprep.subr.mxu0 0.0
  %969 = vmatpush1.msra.mxu0 %v959
  %970 = vmatprep.subr.mxu0 0.0
  %971 = vmatpush1.msra.mxu0 0.0
  %972 = vmatprep.subr.mxu0 0.0
  %973 = vmatpush1.msra.mxu0 0.0
  %974 = vmatprep.subr.mxu0 0.0
  %975 = vmatpush1.msra.mxu0 0.0
  %976 = vmatprep.subr.mxu0 0.0
  %977 = vmatpush1.msra.mxu0 0.0
  %978 = vmatprep.subr.mxu0 0.0
  %979 = vmatpush1.msra.mxu0 0.0
  %980 = vmatprep.subr.mxu0 0.0
  %981 = vmatpush1.msra.mxu0 0.0
  %982 = vmatprep.subr.mxu0 0.0
  %983 = vmatpush1.msra.mxu0 0.0
  %984 = vmatprep.subr.mxu0 0.0
  %985 = vmatpush1.msra.mxu0 0.0
  %986 = vmatprep.subr.mxu0 0.0
  %987 = vmatpush1.msra.mxu0 0.0
  %988 = vmatprep.subr.mxu0 0.0
  %989 = vmatpush1.msra.mxu0 0.0
  %990 = vmatprep.subr.mxu0 0.0
  %991 = vmatpush1.msra.mxu0 0.0
  %992 = vmatprep.subr.mxu0 0.0
  %993 = vmatpush1.msra.mxu0 0.0
  %994 = vmatprep.subr.mxu0 0.0
  %995 = vmatpush1.msra.mxu0 0.0
  %996 = vmatprep.subr.mxu0 0.0
  %997 = vmatpush1.msra.mxu0 0.0
  %998 = vmatprep.subr.mxu0 0.0
  %999 = vmatpush1.msra.mxu0 0.0
  %1000 = vmatprep.subr.mxu0 0.0
  %1001 = vmatpush1.msra.mxu0 0.0
  %1002 = vmatprep.subr.mxu0 0.0
  %1003 = vmatpush1.msra.mxu0 0.0
  %1004 = vmatprep.subr.mxu0 0.0
  %1005 = vmatpush1.msra.mxu0 0.0
  %1006 = vmatprep.subr.mxu0 0.0
  %1007 = vmatpush1.msra.mxu0 0.0
  %1008 = vmatprep.subr.mxu0 0.0
  %1009 = vmatpush1.msra.mxu0 0.0
  %1010 = vmatprep.subr.mxu0 0.0
  %1011 = vmatpush1.msra.mxu0 0.0
  %1012 = vmatprep.subr.mxu0 0.0
  %1013 = vmatpush1.msra.mxu0 0.0
  %1014 = vmatprep.subr.mxu0 0.0
  %1015 = vmatpush1.msra.mxu0 0.0
  %1016 = vmatprep.subr.mxu0 0.0
  %1017 = vmatpush1.msra.mxu0 0.0
  %1018 = vmatprep.subr.mxu0 0.0
  %1019 = vmatpush1.msra.mxu0 0.0
  %1020 = vmatprep.subr.mxu0 0.0
  %1021 = vmatpush1.msra.mxu0 0.0
  %1022 = vmatprep.subr.mxu0 0.0
  %1023 = vmatpush1.msra.mxu0 0.0
  %1024 = vmatprep.subr.mxu0 0.0
  %1025 = vmatpush1.msra.mxu0 0.0
  %1026 = vmatprep.mubr.f32.mxu0 0.0
  %1027 = vmatmul.mubr.f32.gmra.mrb[0].mxu0 %v960
  %v1028 = vpop.f32.mrb[0].mxu0
  %v1029 = vadd.f32 0.0, %v1028
  %v1030 = vpop.f32.mrb[0].mxu0
  %1031 = vdwg.mxu0
  %v1032 = vadd.f32 %v955, %v1029
  %v1033 = vxor.u32 %v1032, 2147483648
  %v1034 = vmul.f32 %v1033, 1.442695
  %v1035 = vpow.pop %v1034
  %v1036 = vadd.f32 %v1035, 1.0
  %v1037 = vrcp.pop %v1036
  %v1038 = vmul.f32 1.0, %v1037
  %v1039 = vtanh.pop %v1032
  %v1040 = vmul.f32 %v1038, %v941
  %1042 = vrot.lane.b32.xlu0 %v1039, 64
  %v1043 = vpop.permute.xlu0 %1042
  %v1045 = vmul.f32 %v1038, %v1043
  %1047 = vrot.lane.b32.xlu0 %v1045, 32
  %v1048 = vpop.permute.xlu0 %1047
  %v1050 = vadd.f32 %v1040, %v1048
  %v1051 = vtanh.pop %v1050
  %1053 = vrot.lane.b32.xlu0 %v1051, 64
  %v1054 = vpop.permute.xlu0 %1053
  %v1056 = vmul.f32 %v1038, %v1054
  %1058 = vrot.lane.b32.xlu0 %v1056, 32
  %v1059 = vpop.permute.xlu0 %1058
  %s1061 = scalar_lea.vmem [#allocation3], 56
  %1062 = vst.msk [vmem:[%s1061] sm:$0xff] %vm192, %v1059
  %1063 = vst.msk [vmem:[#allocation4] sm:$0xff] %vm192, %v1059
  %1065 = vrot.lane.b32.xlu0 %v1050, 96
  %v1066 = vpop.permute.xlu0 %1065
  %1068 = vst.msk [vmem:[#allocation5] sm:$0xff] %vm192, %v1066
  %v1069 = vld [vmem:[#allocation3] sm:$0xff]
  %v1070 = vld [vmem:[#allocation3 + $0x8] sm:$0xff]
  %v1071 = vld [vmem:[#allocation3 + $0x10] sm:$0xff]
  %v1072 = vld [vmem:[#allocation3 + $0x18] sm:$0xff]
  %v1073 = vld [vmem:[#allocation3 + $0x20] sm:$0xff]
  %v1074 = vld [vmem:[#allocation3 + $0x28] sm:$0xff]
  %v1075 = vld [vmem:[#allocation3 + $0x30] sm:$0xff]
  %v1076 = vld [vmem:[#allocation3 + $0x38] sm:$0xff]
  %v1077 = vld [vmem:[%s4] sm:$0xff]
  %v1078 = vld [vmem:[%s4 + $0x8] sm:$0xff]
  %v1079 = vld [vmem:[%s4 + $0x10] sm:$0xff]
  %v1080 = vld [vmem:[%s4 + $0x18] sm:$0xff]
  %v1081 = vld [vmem:[%s5] sm:$0x1]
  %v1083 = vlaneseq
  %v1084 = vshrl.u32 %v1083, 7
  %v1085 = vsub.s32 0, %v1084
  %v1086 = vrot.slane %v1081, %v1085
  %v1089 = vsel %vm192, %v1069, 0
  %v1092 = vsel %vm192, %v1070, 0
  %v1095 = vsel %vm192, %v1071, 0
  %v1098 = vsel %vm192, %v1072, 0
  %v1101 = vsel %vm192, %v1073, 0
  %v1104 = vsel %vm192, %v1074, 0
  %v1107 = vsel %vm192, %v1075, 0
  %v1110 = vsel %vm192, %v1076, 0
  %1112 = vmatprep.subr.mxu0 0.0
  %1113 = vmatpush1.msra.mxu0 %v1077
  %1114 = vmatprep.subr.mxu0 0.0
  %1115 = vmatpush1.msra.mxu0 %v1078
  %1116 = vmatprep.subr.mxu0 0.0
  %1117 = vmatpush1.msra.mxu0 %v1079
  %1118 = vmatprep.subr.mxu0 0.0
  %1119 = vmatpush1.msra.mxu0 %v1080
  %1120 = vmatprep.subr.mxu0 0.0
  %1121 = vmatpush1.msra.mxu0 0.0
  %1122 = vmatprep.subr.mxu0 0.0
  %1123 = vmatpush1.msra.mxu0 0.0
  %1124 = vmatprep.subr.mxu0 0.0
  %1125 = vmatpush1.msra.mxu0 0.0
  %1126 = vmatprep.subr.mxu0 0.0
  %1127 = vmatpush1.msra.mxu0 0.0
  %1128 = vmatprep.subr.mxu0 0.0
  %1129 = vmatpush1.msra.mxu0 0.0
  %1130 = vmatprep.subr.mxu0 0.0
  %1131 = vmatpush1.msra.mxu0 0.0
  %1132 = vmatprep.subr.mxu0 0.0
  %1133 = vmatpush1.msra.mxu0 0.0
  %1134 = vmatprep.subr.mxu0 0.0
  %1135 = vmatpush1.msra.mxu0 0.0
  %1136 = vmatprep.subr.mxu0 0.0
  %1137 = vmatpush1.msra.mxu0 0.0
  %1138 = vmatprep.subr.mxu0 0.0
  %1139 = vmatpush1.msra.mxu0 0.0
  %1140 = vmatprep.subr.mxu0 0.0
  %1141 = vmatpush1.msra.mxu0 0.0
  %1142 = vmatprep.subr.mxu0 0.0
  %1143 = vmatpush1.msra.mxu0 0.0
  %1144 = vmatprep.subr.mxu0 0.0
  %1145 = vmatpush1.msra.mxu0 0.0
  %1146 = vmatprep.subr.mxu0 0.0
  %1147 = vmatpush1.msra.mxu0 0.0
  %1148 = vmatprep.subr.mxu0 0.0
  %1149 = vmatpush1.msra.mxu0 0.0
  %1150 = vmatprep.subr.mxu0 0.0
  %1151 = vmatpush1.msra.mxu0 0.0
  %1152 = vmatprep.subr.mxu0 0.0
  %1153 = vmatpush1.msra.mxu0 0.0
  %1154 = vmatprep.subr.mxu0 0.0
  %1155 = vmatpush1.msra.mxu0 0.0
  %1156 = vmatprep.subr.mxu0 0.0
  %1157 = vmatpush1.msra.mxu0 0.0
  %1158 = vmatprep.subr.mxu0 0.0
  %1159 = vmatpush1.msra.mxu0 0.0
  %1160 = vmatprep.subr.mxu0 0.0
  %1161 = vmatpush1.msra.mxu0 0.0
  %1162 = vmatprep.subr.mxu0 0.0
  %1163 = vmatpush1.msra.mxu0 0.0
  %1164 = vmatprep.subr.mxu0 0.0
  %1165 = vmatpush1.msra.mxu0 0.0
  %1166 = vmatprep.subr.mxu0 0.0
  %1167 = vmatpush1.msra.mxu0 0.0
  %1168 = vmatprep.subr.mxu0 0.0
  %1169 = vmatpush1.msra.mxu0 0.0
  %1170 = vmatprep.subr.mxu0 0.0
  %1171 = vmatpush1.msra.mxu0 0.0
  %1172 = vmatprep.subr.mxu0 0.0
  %1173 = vmatpush1.msra.mxu0 0.0
  %1174 = vmatprep.subr.mxu0 0.0
  %1175 = vmatpush1.msra.mxu0 0.0
  %1176 = vmatprep.mubr.f32.mxu0 0.0
  %1177 = vmatmul.mubr.f32.gmra.mrb[0].mxu0 %v1089
  %v1178 = vpop.f32.mrb[0].mxu0
  %v1179 = vadd.f32 %v1086, %v1178
  %v1180 = vpop.f32.mrb[0].mxu0
  %1181 = vmatprep.mubr.f32.mxu0 0.0
  %1182 = vmatmul.mubr.f32.gmra.mrb[0].mxu0 %v1092
  %v1183 = vpop.f32.mrb[0].mxu0
  %v1184 = vadd.f32 %v1086, %v1183
  %v1185 = vpop.f32.mrb[0].mxu0
  %1186 = vmatprep.mubr.f32.mxu0 0.0
  %1187 = vmatmul.mubr.f32.gmra.mrb[0].mxu0 %v1095
  %v1188 = vpop.f32.mrb[0].mxu0
  %v1189 = vadd.f32 %v1086, %v1188
  %v1190 = vpop.f32.mrb[0].mxu0
  %1191 = vmatprep.mubr.f32.mxu0 0.0
  %1192 = vmatmul.mubr.f32.gmra.mrb[0].mxu0 %v1098
  %v1193 = vpop.f32.mrb[0].mxu0
  %v1194 = vadd.f32 %v1086, %v1193
  %v1195 = vpop.f32.mrb[0].mxu0
  %1196 = vmatprep.mubr.f32.mxu0 0.0
  %1197 = vmatmul.mubr.f32.gmra.mrb[0].mxu0 %v1101
  %v1198 = vpop.f32.mrb[0].mxu0
  %v1199 = vadd.f32 %v1086, %v1198
  %v1200 = vpop.f32.mrb[0].mxu0
  %1201 = vmatprep.mubr.f32.mxu0 0.0
  %1202 = vmatmul.mubr.f32.gmra.mrb[0].mxu0 %v1104
  %v1203 = vpop.f32.mrb[0].mxu0
  %v1204 = vadd.f32 %v1086, %v1203
  %v1205 = vpop.f32.mrb[0].mxu0
  %1206 = vmatprep.mubr.f32.mxu0 0.0
  %1207 = vmatmul.mubr.f32.gmra.mrb[0].mxu0 %v1107
  %v1208 = vpop.f32.mrb[0].mxu0
  %v1209 = vadd.f32 %v1086, %v1208
  %v1210 = vpop.f32.mrb[0].mxu0
  %1211 = vmatprep.mubr.f32.mxu0 0.0
  %1212 = vmatmul.mubr.f32.gmra.mrb[0].mxu0 %v1110
  %v1213 = vpop.f32.mrb[0].mxu0
  %v1214 = vadd.f32 %v1086, %v1213
  %v1215 = vpop.f32.mrb[0].mxu0
  %1216 = vdwg.mxu0
  %1217 = vst [vmem:[%s6] sm:$0xff] %v1179
  %1218 = vst [vmem:[%s6 + $0x8] sm:$0xff] %v1184
  %1219 = vst [vmem:[%s6 + $0x10] sm:$0xff] %v1189
  %1220 = vst [vmem:[%s6 + $0x18] sm:$0xff] %v1194
  %1221 = vst [vmem:[%s6 + $0x20] sm:$0xff] %v1199
  %1222 = vst [vmem:[%s6 + $0x28] sm:$0xff] %v1204
  %1223 = vst [vmem:[%s6 + $0x30] sm:$0xff] %v1209
  %1224 = vst [vmem:[%s6 + $0x38] sm:$0xff] %v1214
  // Predicated region
  $region30: #{_lambda_.1} parent=0 // pred_check
    _
  $region31: #{_lambda_.1} parent=0 // pred_check_branch
    %1226 = sbr.rel (0) target = $region33
  $region32: #{_lambda_.1} parent=0 // pred_region
    _
  $region33: #{_lambda_.1} parent=0 // pred_fallthru
    _
  // Predicated region
  $region34: #{_lambda_.1} parent=0 // pred_check
    _
  $region35: #{_lambda_.1} parent=0 // pred_check_branch
    %1228 = sbr.rel (0) target = $region37
  $region36: #{_lambda_.1} parent=0 // pred_region
    _
  $region37: #{_lambda_.1} parent=0 // pred_fallthru
    _

</llo_original>
